<compile_context>
chip_gen: v5e
topology: v5e:2x2
jax: 0.10.0
libtpu: 0.0.40
codegen_flags: <defaults>
</compile_context>

<pallas_src>
import functools

import jax
import jax.numpy as jnp
from jax.experimental import pallas as pl
from jax.experimental.pallas import tpu as pltpu

STATE_DIM = 1
HIDDEN = [32, 128, 128, 32, 1]


def _mlp_kernel(x_ref,
                w1_ref, b1_ref,
                w2_ref, b2_ref,
                w3_ref, b3_ref,
                w4_ref, b4_ref,
                w5_ref, b5_ref,
                o_ref):
    """Whole MLP for one batch tile.  Data layout: (features, batch)."""
    h = x_ref[...]  # (1, B) f32, batch on lanes

    # Layer 0: in_features == 1 -> degenerate K=1 matmul; do it on the VPU.
    # (32, 1) * (1, B) + (32, 1) -> (32, B), f32.
    h = jnp.maximum(w1_ref[...] * h + b1_ref[...], 0.0)

    # Hidden layers on the MXU: bf16 operands, f32 accumulate.  Bias + ReLU in
    # f32 on the accumulator; downcast only the value fed to the next matmul.
    h = h.astype(jnp.bfloat16)
    h = jnp.maximum(
        jnp.dot(w2_ref[...], h, preferred_element_type=jnp.float32) + b2_ref[...], 0.0)  # (128, B)
    h = h.astype(jnp.bfloat16)
    h = jnp.maximum(
        jnp.dot(w3_ref[...], h, preferred_element_type=jnp.float32) + b3_ref[...], 0.0)  # (128, B)
    h = h.astype(jnp.bfloat16)
    h = jnp.maximum(
        jnp.dot(w4_ref[...], h, preferred_element_type=jnp.float32) + b4_ref[...], 0.0)  # (32, B) f32

    # Layer 4: out_features == 1 -> skip the MXU (M=1 wastes it); VPU multiply
    # + sublane (XLU) reduction instead.  w5 is passed pre-reshaped to (32, 1).
    h = jnp.sum(w5_ref[...] * h, axis=0, keepdims=True) + b5_ref[...]  # (1, B) f32

    o_ref[...] = h.astype(o_ref.dtype)


def choose_tile_b(n, max_tile=4096):
    """Batch tile (multiple of 128) giving a small grid; even step count for v7x."""
    steps = 2
    while -(-n // steps) > max_tile:
        steps += 2
    tile = (-(-n // steps) + 127) // 128 * 128
    return max(tile, 128)


def _resident_spec(arr):
    """Grid-invariant block covering the whole (2-D) array."""
    return pl.BlockSpec(arr.shape, lambda i: (0, 0))


@functools.partial(jax.jit, static_argnames=("tile_b",))
def mlp_forward(u, params, tile_b):
    """u: (N, 1) float32 -> (N, 1) float32 via the Pallas MLP kernel."""
    n = u.shape[0]

    # Lane-dense layout: (N, 1) -> (1, N) is a pure relabel (no data movement).
    x = u.astype(jnp.float32).reshape(1, n)

    (w1, b1), (w2, b2), (w3, b3), (w4, b4), (w5, b5) = params
    # bf16 copies of the MXU weights (tiny, one-time convert).
    w2b = w2.astype(jnp.bfloat16)
    w3b = w3.astype(jnp.bfloat16)
    w4b = w4.astype(jnp.bfloat16)
    # Final layer weight as a (32, 1) column for the VPU/XLU path.
    w5c = w5.reshape(-1, 1)

    weight_args = [w1, b1, w2b, b2, w3b, b3, w4b, b4, w5c, b5]

    in_specs = [pl.BlockSpec((1, tile_b), lambda i: (0, i))]
    in_specs += [_resident_spec(a) for a in weight_args]
    out_spec = pl.BlockSpec((1, tile_b), lambda i: (0, i))

    layer_macs = 0
    prev = STATE_DIM
    for h in HIDDEN:
        layer_macs += prev * h
        prev = h
    param_count = sum(a.size for a in weight_args)
    cost = pl.CostEstimate(
        flops=2 * n * layer_macs,
        transcendentals=0,
        bytes_accessed=4 * 2 * n + 2 * param_count,
    )

    out = pl.pallas_call(
        _mlp_kernel,
        out_shape=jax.ShapeDtypeStruct((1, n), jnp.float32),
        grid=(pl.cdiv(n, tile_b),),
        in_specs=in_specs,
        out_specs=out_spec,
        compiler_params=pltpu.CompilerParams(
            dimension_semantics=("parallel",)),
        cost_estimate=cost,
    )(x, *weight_args)

    # (1, N) -> (N, 1): again a free relabel; no pad/slice/transpose round-trips.
    return out.reshape(n, 1)


def init_params(key):
    """Xavier-normal weights, zero biases (matches _initial_param semantics).

    Weights stored PyTorch-style as (out_features, in_features);
    biases as (out_features, 1) (column vectors for the transposed layout).
    """
    dims = [STATE_DIM] + HIDDEN
    params = []
    for i in range(len(HIDDEN)):
        fan_in, fan_out = dims[i], dims[i + 1]
        key, sub = jax.random.split(key)
        std = (2.0 / (fan_in + fan_out)) ** 0.5
        w = std * jax.random.normal(sub, (fan_out, fan_in), dtype=jnp.float32)
        b = jnp.zeros((fan_out, 1), dtype=jnp.float32)
        params.append((w, b))
    return params


def reference_mlp(u, params):
    """Pure-JAX f32 reference for self.net (x @ W^T + b, ReLU between layers)."""
    h = u.astype(jnp.float32)
    for idx, (w, b) in enumerate(params):
        h = jnp.dot(h, w.T, precision=jax.lax.Precision.HIGHEST) + b.T
        if idx != len(params) - 1:
            h = jnp.maximum(h, 0.0)
    return h


# TODO(synk): solution_net is an external nn.Module passed into forward(); a
# smooth pure-JAX analytic stand-in is used here for the demo.
def solution_net(position):
    return jnp.sin(position[:, :1]) * jnp.cos(position[:, 1:2])  # (N, 1)


def nonpara_gcd_forward(position, net_params, D, lamda, mlp_fn):
    """Full NonParaGCDEquation.forward semantics -> {'loss_eq': scalar}."""
    D_1, D_2, D_3 = D
    U_ = solution_net(position)
    F_ = mlp_fn(U_, net_params)
    U_later = solution_net(position + jnp.array([0.1, 0.0], jnp.float32))
    u_t = U_later - U_
    U_x_later = solution_net(position + jnp.array([0.0, 0.1], jnp.float32))
    U_x_before = solution_net(position + jnp.array([0.0, -0.1], jnp.float32))
    grad_u = (U_x_later - U_x_before) / 2.0
    lap_u = U_x_later - U_ * 2.0 + U_x_before
    rhs = D_1 * lap_u * 10.0 + D_2 * grad_u + D_3 * U_ + F_ * 0.01
    loss_eq = jnp.mean(jnp.square(u_t - rhs)) + lamda * jnp.mean(jnp.square(F_))
    return {"loss_eq": loss_eq}


if __name__ == "__main__":
    key = jax.random.PRNGKey(0)
    key, pk, xk = jax.random.split(key, 3)

    n = 1024  # choose_tile_b -> tile 512, grid (2,): both v7x cores get work
    position = jax.random.uniform(xk, (n, 2), dtype=jnp.float32,
                                  minval=-1.0, maxval=1.0)
    params = init_params(pk)
    # D_1, D_2, D_3 initialized to 0.0, lamda default 0 (as in the module).
    D = (jnp.float32(0.0), jnp.float32(0.0), jnp.float32(0.0))
    lamda = 0.0

    tile_b = choose_tile_b(n)

    # 1) Pallas MLP (self.net applied to U_) vs pure-JAX f32 reference.
    #    bf16 MXU path -> tolerance relative to the output scale.
    U_ = solution_net(position)
    f_kernel = jax.block_until_ready(mlp_forward(U_, params, tile_b=tile_b))
    f_ref = reference_mlp(U_, params)
    assert f_kernel.shape == (n, 1)
    scale = float(jnp.max(jnp.abs(f_ref)))
    max_err = float(jnp.max(jnp.abs(f_kernel - f_ref)))
    assert max_err <= 0.02 * scale + 1e-4, f"MLP mismatch vs reference: {max_err} (scale {scale})"

    # 1b) Ragged batch (grid does not divide N): exercises the no-pad path.
    n2 = 300
    U2 = solution_net(position[:n2])
    tile2 = choose_tile_b(n2)
    f2_kernel = jax.block_until_ready(mlp_forward(U2, params, tile_b=tile2))
    f2_ref = reference_mlp(U2, params)
    err2 = float(jnp.max(jnp.abs(f2_kernel - f2_ref)))
    assert err2 <= 0.02 * float(jnp.max(jnp.abs(f2_ref))) + 1e-4, "ragged MLP mismatch"

    # 2) Full NonParaGCDEquation forward (loss_eq) using the kernel.
    out = nonpara_gcd_forward(
        position, params, D, lamda,
        mlp_fn=lambda u, p: mlp_forward(u, p, tile_b=tile_b))
    loss = jax.block_until_ready(out["loss_eq"])
    loss_ref = nonpara_gcd_forward(position, params, D, lamda,
                                   mlp_fn=reference_mlp)["loss_eq"]
    assert jnp.allclose(loss, loss_ref, atol=1e-5, rtol=1e-2), "loss_eq mismatch vs reference"

    print("KERNEL_OK")
</pallas_src>

<mosaic_0001>
module attributes {stable_mosaic.version = 11 : i64} {
  func.func @_mlp_kernel(%arg0: i32, %arg1: memref<1x512xf32, #tpu.memory_space<vmem>>, %arg2: memref<32x1xf32, #tpu.memory_space<vmem>>, %arg3: memref<32x1xf32, #tpu.memory_space<vmem>>, %arg4: memref<128x32xbf16, #tpu.memory_space<vmem>>, %arg5: memref<128x1xf32, #tpu.memory_space<vmem>>, %arg6: memref<128x128xbf16, #tpu.memory_space<vmem>>, %arg7: memref<128x1xf32, #tpu.memory_space<vmem>>, %arg8: memref<32x128xbf16, #tpu.memory_space<vmem>>, %arg9: memref<32x1xf32, #tpu.memory_space<vmem>>, %arg10: memref<32x1xf32, #tpu.memory_space<vmem>>, %arg11: memref<1x1xf32, #tpu.memory_space<vmem>>, %arg12: memref<1x512xf32, #tpu.memory_space<vmem>>) attributes {dimension_semantics = [#tpu.dimension_semantics<parallel>], iteration_bounds = array<i64: 2>, scalar_prefetch = 0 : i64, scratch_operands = 0 : i64, tpu.core_type = #tpu.core_type<tc>, window_params = [{transform_indices = @transform_0, window_bounds = array<i64: 1, 512>}, {pipeline_mode = #tpu.pipeline_mode<synchronous>, transform_indices = @transform_1, window_bounds = array<i64: 32, 1>}, {pipeline_mode = #tpu.pipeline_mode<synchronous>, transform_indices = @transform_2, window_bounds = array<i64: 32, 1>}, {pipeline_mode = #tpu.pipeline_mode<synchronous>, transform_indices = @transform_3, window_bounds = array<i64: 128, 32>}, {pipeline_mode = #tpu.pipeline_mode<synchronous>, transform_indices = @transform_4, window_bounds = array<i64: 128, 1>}, {pipeline_mode = #tpu.pipeline_mode<synchronous>, transform_indices = @transform_5, window_bounds = array<i64: 128, 128>}, {pipeline_mode = #tpu.pipeline_mode<synchronous>, transform_indices = @transform_6, window_bounds = array<i64: 128, 1>}, {pipeline_mode = #tpu.pipeline_mode<synchronous>, transform_indices = @transform_7, window_bounds = array<i64: 32, 128>}, {pipeline_mode = #tpu.pipeline_mode<synchronous>, transform_indices = @transform_8, window_bounds = array<i64: 32, 1>}, {pipeline_mode = #tpu.pipeline_mode<synchronous>, transform_indices = @transform_9, window_bounds = array<i64: 32, 1>}, {pipeline_mode = #tpu.pipeline_mode<synchronous>, transform_indices = @transform_10, window_bounds = array<i64: 1, 1>}, {transform_indices = @transform_11, window_bounds = array<i64: 1, 512>}]} {
    %c0 = arith.constant 0 : index
    %c0_0 = arith.constant 0 : index
    %0 = vector.load %arg1[%c0, %c0_0] : memref<1x512xf32, #tpu.memory_space<vmem>>, vector<1x512xf32>
    %c0_1 = arith.constant 0 : index
    %c0_2 = arith.constant 0 : index
    %1 = vector.load %arg2[%c0_1, %c0_2] : memref<32x1xf32, #tpu.memory_space<vmem>>, vector<32x1xf32>
    %2 = vector.broadcast %1 : vector<32x1xf32> to vector<32x512xf32>
    %3 = vector.broadcast %0 : vector<1x512xf32> to vector<32x512xf32>
    %4 = arith.mulf %2, %3 : vector<32x512xf32>
    %c0_3 = arith.constant 0 : index
    %c0_4 = arith.constant 0 : index
    %5 = vector.load %arg3[%c0_3, %c0_4] : memref<32x1xf32, #tpu.memory_space<vmem>>, vector<32x1xf32>
    %6 = vector.broadcast %5 : vector<32x1xf32> to vector<32x512xf32>
    %7 = arith.addf %4, %6 : vector<32x512xf32>
    %cst = arith.constant 0.000000e+00 : f32
    %8 = vector.broadcast %cst : f32 to vector<32x512xf32>
    %9 = arith.maximumf %7, %8 : vector<32x512xf32>
    %10 = arith.truncf %9 : vector<32x512xf32> to vector<32x512xbf16>
    %c0_5 = arith.constant 0 : index
    %c0_6 = arith.constant 0 : index
    %11 = vector.load %arg4[%c0_5, %c0_6] : memref<128x32xbf16, #tpu.memory_space<vmem>>, vector<128x32xbf16>
    %cst_7 = arith.constant dense<0.000000e+00> : vector<128x512xf32>
    %12 = tpu.matmul %11, %10, %cst_7 {dimension_numbers = #tpu.dot_dimension_numbers<[1], [0], [0], [1], [0, 0, 1, 1], [], []>} : vector<128x32xbf16>, vector<32x512xbf16>, vector<128x512xf32> -> vector<128x512xf32>
    %c0_8 = arith.constant 0 : index
    %c0_9 = arith.constant 0 : index
    %13 = vector.load %arg5[%c0_8, %c0_9] : memref<128x1xf32, #tpu.memory_space<vmem>>, vector<128x1xf32>
    %14 = vector.broadcast %13 : vector<128x1xf32> to vector<128x512xf32>
    %15 = arith.addf %12, %14 : vector<128x512xf32>
    %cst_10 = arith.constant 0.000000e+00 : f32
    %16 = vector.broadcast %cst_10 : f32 to vector<128x512xf32>
    %17 = arith.maximumf %15, %16 : vector<128x512xf32>
    %18 = arith.truncf %17 : vector<128x512xf32> to vector<128x512xbf16>
    %c0_11 = arith.constant 0 : index
    %c0_12 = arith.constant 0 : index
    %19 = vector.load %arg6[%c0_11, %c0_12] : memref<128x128xbf16, #tpu.memory_space<vmem>>, vector<128x128xbf16>
    %cst_13 = arith.constant dense<0.000000e+00> : vector<128x512xf32>
    %20 = tpu.matmul %19, %18, %cst_13 {dimension_numbers = #tpu.dot_dimension_numbers<[1], [0], [0], [1], [0, 0, 1, 1], [], []>} : vector<128x128xbf16>, vector<128x512xbf16>, vector<128x512xf32> -> vector<128x512xf32>
    %c0_14 = arith.constant 0 : index
    %c0_15 = arith.constant 0 : index
    %21 = vector.load %arg7[%c0_14, %c0_15] : memref<128x1xf32, #tpu.memory_space<vmem>>, vector<128x1xf32>
    %22 = vector.broadcast %21 : vector<128x1xf32> to vector<128x512xf32>
    %23 = arith.addf %20, %22 : vector<128x512xf32>
    %cst_16 = arith.constant 0.000000e+00 : f32
    %24 = vector.broadcast %cst_16 : f32 to vector<128x512xf32>
    %25 = arith.maximumf %23, %24 : vector<128x512xf32>
    %26 = arith.truncf %25 : vector<128x512xf32> to vector<128x512xbf16>
    %c0_17 = arith.constant 0 : index
    %c0_18 = arith.constant 0 : index
    %27 = vector.load %arg8[%c0_17, %c0_18] : memref<32x128xbf16, #tpu.memory_space<vmem>>, vector<32x128xbf16>
    %cst_19 = arith.constant dense<0.000000e+00> : vector<32x512xf32>
    %28 = tpu.matmul %27, %26, %cst_19 {dimension_numbers = #tpu.dot_dimension_numbers<[1], [0], [0], [1], [0, 0, 1, 1], [], []>} : vector<32x128xbf16>, vector<128x512xbf16>, vector<32x512xf32> -> vector<32x512xf32>
    %c0_20 = arith.constant 0 : index
    %c0_21 = arith.constant 0 : index
    %29 = vector.load %arg9[%c0_20, %c0_21] : memref<32x1xf32, #tpu.memory_space<vmem>>, vector<32x1xf32>
    %30 = vector.broadcast %29 : vector<32x1xf32> to vector<32x512xf32>
    %31 = arith.addf %28, %30 : vector<32x512xf32>
    %cst_22 = arith.constant 0.000000e+00 : f32
    %32 = vector.broadcast %cst_22 : f32 to vector<32x512xf32>
    %33 = arith.maximumf %31, %32 : vector<32x512xf32>
    %c0_23 = arith.constant 0 : index
    %c0_24 = arith.constant 0 : index
    %34 = vector.load %arg10[%c0_23, %c0_24] : memref<32x1xf32, #tpu.memory_space<vmem>>, vector<32x1xf32>
    %35 = vector.broadcast %34 : vector<32x1xf32> to vector<32x512xf32>
    %36 = arith.mulf %35, %33 : vector<32x512xf32>
    %cst_25 = arith.constant dense<0.000000e+00> : vector<512xf32>
    %37 = vector.multi_reduction <add>, %36, %cst_25 [0] : vector<32x512xf32> to vector<512xf32>
    %38 = vector.shape_cast %37 : vector<512xf32> to vector<1x512xf32>
    %c0_26 = arith.constant 0 : index
    %c0_27 = arith.constant 0 : index
    %39 = vector.load %arg11[%c0_26, %c0_27] : memref<1x1xf32, #tpu.memory_space<vmem>>, vector<1x1xf32>
    %40 = vector.broadcast %39 : vector<1x1xf32> to vector<1x512xf32>
    %41 = arith.addf %38, %40 : vector<1x512xf32>
    %c0_28 = arith.constant 0 : index
    %c0_29 = arith.constant 0 : index
    %42 = vector.load %arg12[%c0_28, %c0_29] : memref<1x512xf32, #tpu.memory_space<vmem>>, vector<1x512xf32>
    tpu.vector_store %arg12[%c0_28, %c0_29], %41 {strides = array<i32>} : memref<1x512xf32, #tpu.memory_space<vmem>>, vector<1x512xf32>,
    return
  }
  func.func @transform_0(%arg0: i32) -> (i32, i32) {
    %c0_i32 = arith.constant 0 : i32
    %c0_i32_0 = arith.constant 0 : i32
    return %c0_i32, %arg0 : i32, i32
  }
  func.func @transform_1(%arg0: i32) -> (i32, i32) {
    %c0_i32 = arith.constant 0 : i32
    %c0_i32_0 = arith.constant 0 : i32
    %c0_i32_1 = arith.constant 0 : i32
    return %c0_i32, %c0_i32_0 : i32, i32
  }
  func.func @transform_2(%arg0: i32) -> (i32, i32) {
    %c0_i32 = arith.constant 0 : i32
    %c0_i32_0 = arith.constant 0 : i32
    %c0_i32_1 = arith.constant 0 : i32
    return %c0_i32, %c0_i32_0 : i32, i32
  }
  func.func @transform_3(%arg0: i32) -> (i32, i32) {
    %c0_i32 = arith.constant 0 : i32
    %c0_i32_0 = arith.constant 0 : i32
    %c0_i32_1 = arith.constant 0 : i32
    return %c0_i32, %c0_i32_0 : i32, i32
  }
  func.func @transform_4(%arg0: i32) -> (i32, i32) {
    %c0_i32 = arith.constant 0 : i32
    %c0_i32_0 = arith.constant 0 : i32
    %c0_i32_1 = arith.constant 0 : i32
    return %c0_i32, %c0_i32_0 : i32, i32
  }
  func.func @transform_5(%arg0: i32) -> (i32, i32) {
    %c0_i32 = arith.constant 0 : i32
    %c0_i32_0 = arith.constant 0 : i32
    %c0_i32_1 = arith.constant 0 : i32
    return %c0_i32, %c0_i32_0 : i32, i32
  }
  func.func @transform_6(%arg0: i32) -> (i32, i32) {
    %c0_i32 = arith.constant 0 : i32
    %c0_i32_0 = arith.constant 0 : i32
    %c0_i32_1 = arith.constant 0 : i32
    return %c0_i32, %c0_i32_0 : i32, i32
  }
  func.func @transform_7(%arg0: i32) -> (i32, i32) {
    %c0_i32 = arith.constant 0 : i32
    %c0_i32_0 = arith.constant 0 : i32
    %c0_i32_1 = arith.constant 0 : i32
    return %c0_i32, %c0_i32_0 : i32, i32
  }
  func.func @transform_8(%arg0: i32) -> (i32, i32) {
    %c0_i32 = arith.constant 0 : i32
    %c0_i32_0 = arith.constant 0 : i32
    %c0_i32_1 = arith.constant 0 : i32
    return %c0_i32, %c0_i32_0 : i32, i32
  }
  func.func @transform_9(%arg0: i32) -> (i32, i32) {
    %c0_i32 = arith.constant 0 : i32
    %c0_i32_0 = arith.constant 0 : i32
    %c0_i32_1 = arith.constant 0 : i32
    return %c0_i32, %c0_i32_0 : i32, i32
  }
  func.func @transform_10(%arg0: i32) -> (i32, i32) {
    %c0_i32 = arith.constant 0 : i32
    %c0_i32_0 = arith.constant 0 : i32
    %c0_i32_1 = arith.constant 0 : i32
    return %c0_i32, %c0_i32_0 : i32, i32
  }
  func.func @transform_11(%arg0: i32) -> (i32, i32) {
    %c0_i32 = arith.constant 0 : i32
    %c0_i32_0 = arith.constant 0 : i32
    return %c0_i32, %arg0 : i32, i32
  }
}

</mosaic_0001>

<llo_original>
// kernel: mlp_forward.1
$region0: #{mlp_forward.1}
  #allocation0 [shape = 'u32[]', space=smem, size = 0x4, offset = 0x4, fixed_abs, tag = 'smem constant byte address 0x4 - core index']
  #allocation1 [shape = 'u32[72,128]{1,0:T(1,128)}', space=vmem, size = 0x9000, scoped, tag = 'internal scratch']
  #allocation2 [shape = 'f32[1,1]{1,0:T(1,128)S(1)}', space=vmem, size = 0x200, scoped, tag = 'scoped memory for mlp_forward.1']
  %s0 = inlined_call_operand.vmem [shape: f32[1,1024], index: 0, kind: input, shape index: {}]
  %s1 = inlined_call_operand.vmem [shape: f32[32,1], index: 1, kind: input, shape index: {}]
  %s2 = inlined_call_operand.vmem [shape: f32[32,1], index: 2, kind: input, shape index: {}]
  %s3 = inlined_call_operand.vmem [shape: bf16[128,32], index: 3, kind: input, shape index: {}]
  %s4 = inlined_call_operand.vmem [shape: f32[128,1], index: 4, kind: input, shape index: {}]
  %s5 = inlined_call_operand.vmem [shape: bf16[128,128], index: 5, kind: input, shape index: {}]
  %s6 = inlined_call_operand.vmem [shape: f32[128,1], index: 6, kind: input, shape index: {}]
  %s7 = inlined_call_operand.vmem [shape: bf16[32,128], index: 7, kind: input, shape index: {}]
  %s8 = inlined_call_operand.vmem [shape: f32[32,1], index: 8, kind: input, shape index: {}]
  %s9 = inlined_call_operand.vmem [shape: f32[32,1], index: 9, kind: input, shape index: {}]
  %s10 = inlined_call_operand.<no memory space> [shape: f32[1,1], index: 10, kind: input, shape index: {}]
  %s11 = inlined_call_operand.hbm [shape: f32[1,1024], index: 11, kind: output, shape index: {}]
  %s12 = sld [smem:[#allocation0]]
  $region77: #{mlp_forward.1} parent=0
    _
  %s14 = ssub.s32 1, %s12
  %s15 = scalar_select 0, %s14, %s12
  %v16 = vstv %s10
  %17 = vst [vmem:[#allocation2] sm:$0x1] %v16
  $region1: #{mlp_forward.1} parent=0
    #allocation3 [shape = 'u8[4096]{0}', space=vmem, size = 0x1000, scoped, tag = 'output window, operand 0']
    #allocation4 [shape = 's32[2]{0}', space=sflag, size = 0x8, scoped, tag = 'scoped memory for mlp_forward.1']
    %18 = vsyncpa [#allocation4], 0
    %s19 = scalar_lea.sflag [#allocation4], 1
    %20 = vsyncpa %s19, 0
    loop: start=0, step=1, limit=4
    $region2: #{mlp_forward.1} parent=1 // loop_pre_header
      _
    $region3: #{mlp_forward.1} parent=1 // loop_header
      %s22 = sphi 0, %s26
      %p23 = scmp.ge.s32.totalorder %s22, 4
      %s32 = sphi 0, %s34
      %s35 = sphi 0, %s32
      %s36 = sphi 0, %s35
      %s52 = sphi 0, %s36
      %s56 = sphi 0, %s56
      %s58 = sphi 0, %s56
      %s59 = sphi 0, %s58
      %s73 = sphi 0, %s59
      %s77 = sphi 0, %s77
      %s79 = sphi 0, %s77
      %s80 = sphi 0, %s79
      %s94 = sphi 0, %s80
      %s98 = sphi 0, %s98
      %s100 = sphi 0, %s98
      %s101 = sphi 0, %s100
      %s115 = sphi 0, %s101
      %s119 = sphi 0, %s119
      %s121 = sphi 0, %s119
      %s122 = sphi 0, %s121
      %s136 = sphi 0, %s122
      %s140 = sphi 0, %s140
      %s142 = sphi 0, %s140
      %s143 = sphi 0, %s142
      %s157 = sphi 0, %s143
      %s161 = sphi 0, %s161
      %s163 = sphi 0, %s161
      %s164 = sphi 0, %s163
      %s178 = sphi 0, %s164
      %s182 = sphi 0, %s182
      %s184 = sphi 0, %s182
      %s185 = sphi 0, %s184
      %s199 = sphi 0, %s185
      %s203 = sphi 0, %s203
      %s205 = sphi 0, %s203
      %s206 = sphi 0, %s205
      %s220 = sphi 0, %s206
      %s224 = sphi 0, %s224
      %s226 = sphi 0, %s224
      %s227 = sphi 0, %s226
      %s241 = sphi 0, %s227
      %s245 = sphi 0, %s245
      %s247 = sphi 0, %s245
      %s248 = sphi 0, %s247
      %s262 = sphi 0, %s248
      %s268 = sphi 0, %s270
      %s271 = sphi 0, %s268
      %s272 = sphi 0, %s271
      %s288 = sphi 0, %s272
    $region4: #{mlp_forward.1} parent=1 // loop_header_branch
      %25 = sbr.rel (%p23) target = $region8
    $region5: #{mlp_forward.1} parent=1 // loop_body
      %s27 = ssub.s32 %s22, 1
      %s28 = ssub.s32 %s22, 2
      %s29 = sadd.s32 %s22, 1
      %s30 = ssub.s32 %s22, %s29
      %p31 = scmp.eq.s32.totalorder %s30, 0
      %s33 = sadd.s32 %s32, 1
      %s34 = scalar_select %p31, %s32, %s33
      %p37 = pneg %p31
      %p38 = scmp.eq.s32.totalorder %s22, 1
      %p39 = por %p37, %p38
      %p40 = scmp.ne.s32.totalorder %s32, %s35
      %p41 = scmp.eq.s32.totalorder %s22, 0
      %p42 = por %p40, %p41
      %p43 = scmp.ne.s32.totalorder %s32, %s35
      %p44 = scmp.eq.s32.totalorder %s27, 1
      %p45 = por %p43, %p44
      %p46 = scmp.ne.s32.totalorder %s35, %s36
      %p47 = scmp.eq.s32.totalorder %s27, 0
      %p48 = por %p46, %p47
      %p49 = scmp.ne.s32.totalorder %s35, %s36
      %p50 = scmp.eq.s32.totalorder %s28, 1
      %p51 = por %p49, %p50
      %p53 = scmp.ne.s32.totalorder %s36, %s52
      %p54 = scmp.eq.s32.totalorder %s28, 0
      %p55 = por %p53, %p54
      %s57 = sadd.s32 %s56, 1
      %p60 = scmp.eq.s32.totalorder %s22, 1
      %p61 = scmp.ne.s32.totalorder %s56, %s58
      %p62 = scmp.eq.s32.totalorder %s22, 0
      %p63 = por %p61, %p62
      %p64 = scmp.ne.s32.totalorder %s56, %s58
      %p65 = scmp.eq.s32.totalorder %s27, 1
      %p66 = por %p64, %p65
      %p67 = scmp.ne.s32.totalorder %s58, %s59
      %p68 = scmp.eq.s32.totalorder %s27, 0
      %p69 = por %p67, %p68
      %p70 = scmp.ne.s32.totalorder %s58, %s59
      %p71 = scmp.eq.s32.totalorder %s28, 1
      %p72 = por %p70, %p71
      %p74 = scmp.ne.s32.totalorder %s59, %s73
      %p75 = scmp.eq.s32.totalorder %s28, 0
      %p76 = por %p74, %p75
      %s78 = sadd.s32 %s77, 1
      %p81 = scmp.eq.s32.totalorder %s22, 1
      %p82 = scmp.ne.s32.totalorder %s77, %s79
      %p83 = scmp.eq.s32.totalorder %s22, 0
      %p84 = por %p82, %p83
      %p85 = scmp.ne.s32.totalorder %s77, %s79
      %p86 = scmp.eq.s32.totalorder %s27, 1
      %p87 = por %p85, %p86
      %p88 = scmp.ne.s32.totalorder %s79, %s80
      %p89 = scmp.eq.s32.totalorder %s27, 0
      %p90 = por %p88, %p89
      %p91 = scmp.ne.s32.totalorder %s79, %s80
      %p92 = scmp.eq.s32.totalorder %s28, 1
      %p93 = por %p91, %p92
      %p95 = scmp.ne.s32.totalorder %s80, %s94
      %p96 = scmp.eq.s32.totalorder %s28, 0
      %p97 = por %p95, %p96
      %s99 = sadd.s32 %s98, 1
      %p102 = scmp.eq.s32.totalorder %s22, 1
      %p103 = scmp.ne.s32.totalorder %s98, %s100
      %p104 = scmp.eq.s32.totalorder %s22, 0
      %p105 = por %p103, %p104
      %p106 = scmp.ne.s32.totalorder %s98, %s100
      %p107 = scmp.eq.s32.totalorder %s27, 1
      %p108 = por %p106, %p107
      %p109 = scmp.ne.s32.totalorder %s100, %s101
      %p110 = scmp.eq.s32.totalorder %s27, 0
      %p111 = por %p109, %p110
      %p112 = scmp.ne.s32.totalorder %s100, %s101
      %p113 = scmp.eq.s32.totalorder %s28, 1
      %p114 = por %p112, %p113
      %p116 = scmp.ne.s32.totalorder %s101, %s115
      %p117 = scmp.eq.s32.totalorder %s28, 0
      %p118 = por %p116, %p117
      %s120 = sadd.s32 %s119, 1
      %p123 = scmp.eq.s32.totalorder %s22, 1
      %p124 = scmp.ne.s32.totalorder %s119, %s121
      %p125 = scmp.eq.s32.totalorder %s22, 0
      %p126 = por %p124, %p125
      %p127 = scmp.ne.s32.totalorder %s119, %s121
      %p128 = scmp.eq.s32.totalorder %s27, 1
      %p129 = por %p127, %p128
      %p130 = scmp.ne.s32.totalorder %s121, %s122
      %p131 = scmp.eq.s32.totalorder %s27, 0
      %p132 = por %p130, %p131
      %p133 = scmp.ne.s32.totalorder %s121, %s122
      %p134 = scmp.eq.s32.totalorder %s28, 1
      %p135 = por %p133, %p134
      %p137 = scmp.ne.s32.totalorder %s122, %s136
      %p138 = scmp.eq.s32.totalorder %s28, 0
      %p139 = por %p137, %p138
      %s141 = sadd.s32 %s140, 1
      %p144 = scmp.eq.s32.totalorder %s22, 1
      %p145 = scmp.ne.s32.totalorder %s140, %s142
      %p146 = scmp.eq.s32.totalorder %s22, 0
      %p147 = por %p145, %p146
      %p148 = scmp.ne.s32.totalorder %s140, %s142
      %p149 = scmp.eq.s32.totalorder %s27, 1
      %p150 = por %p148, %p149
      %p151 = scmp.ne.s32.totalorder %s142, %s143
      %p152 = scmp.eq.s32.totalorder %s27, 0
      %p153 = por %p151, %p152
      %p154 = scmp.ne.s32.totalorder %s142, %s143
      %p155 = scmp.eq.s32.totalorder %s28, 1
      %p156 = por %p154, %p155
      %p158 = scmp.ne.s32.totalorder %s143, %s157
      %p159 = scmp.eq.s32.totalorder %s28, 0
      %p160 = por %p158, %p159
      %s162 = sadd.s32 %s161, 1
      %p165 = scmp.eq.s32.totalorder %s22, 1
      %p166 = scmp.ne.s32.totalorder %s161, %s163
      %p167 = scmp.eq.s32.totalorder %s22, 0
      %p168 = por %p166, %p167
      %p169 = scmp.ne.s32.totalorder %s161, %s163
      %p170 = scmp.eq.s32.totalorder %s27, 1
      %p171 = por %p169, %p170
      %p172 = scmp.ne.s32.totalorder %s163, %s164
      %p173 = scmp.eq.s32.totalorder %s27, 0
      %p174 = por %p172, %p173
      %p175 = scmp.ne.s32.totalorder %s163, %s164
      %p176 = scmp.eq.s32.totalorder %s28, 1
      %p177 = por %p175, %p176
      %p179 = scmp.ne.s32.totalorder %s164, %s178
      %p180 = scmp.eq.s32.totalorder %s28, 0
      %p181 = por %p179, %p180
      %s183 = sadd.s32 %s182, 1
      %p186 = scmp.eq.s32.totalorder %s22, 1
      %p187 = scmp.ne.s32.totalorder %s182, %s184
      %p188 = scmp.eq.s32.totalorder %s22, 0
      %p189 = por %p187, %p188
      %p190 = scmp.ne.s32.totalorder %s182, %s184
      %p191 = scmp.eq.s32.totalorder %s27, 1
      %p192 = por %p190, %p191
      %p193 = scmp.ne.s32.totalorder %s184, %s185
      %p194 = scmp.eq.s32.totalorder %s27, 0
      %p195 = por %p193, %p194
      %p196 = scmp.ne.s32.totalorder %s184, %s185
      %p197 = scmp.eq.s32.totalorder %s28, 1
      %p198 = por %p196, %p197
      %p200 = scmp.ne.s32.totalorder %s185, %s199
      %p201 = scmp.eq.s32.totalorder %s28, 0
      %p202 = por %p200, %p201
      %s204 = sadd.s32 %s203, 1
      %p207 = scmp.eq.s32.totalorder %s22, 1
      %p208 = scmp.ne.s32.totalorder %s203, %s205
      %p209 = scmp.eq.s32.totalorder %s22, 0
      %p210 = por %p208, %p209
      %p211 = scmp.ne.s32.totalorder %s203, %s205
      %p212 = scmp.eq.s32.totalorder %s27, 1
      %p213 = por %p211, %p212
      %p214 = scmp.ne.s32.totalorder %s205, %s206
      %p215 = scmp.eq.s32.totalorder %s27, 0
      %p216 = por %p214, %p215
      %p217 = scmp.ne.s32.totalorder %s205, %s206
      %p218 = scmp.eq.s32.totalorder %s28, 1
      %p219 = por %p217, %p218
      %p221 = scmp.ne.s32.totalorder %s206, %s220
      %p222 = scmp.eq.s32.totalorder %s28, 0
      %p223 = por %p221, %p222
      %s225 = sadd.s32 %s224, 1
      %p228 = scmp.eq.s32.totalorder %s22, 1
      %p229 = scmp.ne.s32.totalorder %s224, %s226
      %p230 = scmp.eq.s32.totalorder %s22, 0
      %p231 = por %p229, %p230
      %p232 = scmp.ne.s32.totalorder %s224, %s226
      %p233 = scmp.eq.s32.totalorder %s27, 1
      %p234 = por %p232, %p233
      %p235 = scmp.ne.s32.totalorder %s226, %s227
      %p236 = scmp.eq.s32.totalorder %s27, 0
      %p237 = por %p235, %p236
      %p238 = scmp.ne.s32.totalorder %s226, %s227
      %p239 = scmp.eq.s32.totalorder %s28, 1
      %p240 = por %p238, %p239
      %p242 = scmp.ne.s32.totalorder %s227, %s241
      %p243 = scmp.eq.s32.totalorder %s28, 0
      %p244 = por %p242, %p243
      %s246 = sadd.s32 %s245, 1
      %p249 = scmp.eq.s32.totalorder %s22, 1
      %p250 = scmp.ne.s32.totalorder %s245, %s247
      %p251 = scmp.eq.s32.totalorder %s22, 0
      %p252 = por %p250, %p251
      %p253 = scmp.ne.s32.totalorder %s245, %s247
      %p254 = scmp.eq.s32.totalorder %s27, 1
      %p255 = por %p253, %p254
      %p256 = scmp.ne.s32.totalorder %s247, %s248
      %p257 = scmp.eq.s32.totalorder %s27, 0
      %p258 = por %p256, %p257
      %p259 = scmp.ne.s32.totalorder %s247, %s248
      %p260 = scmp.eq.s32.totalorder %s28, 1
      %p261 = por %p259, %p260
      %p263 = scmp.ne.s32.totalorder %s248, %s262
      %p264 = scmp.eq.s32.totalorder %s28, 0
      %p265 = por %p263, %p264
      %s266 = ssub.s32 %s22, %s29
      %p267 = scmp.eq.s32.totalorder %s266, 0
      %s269 = sadd.s32 %s268, 1
      %s270 = scalar_select %p267, %s268, %s269
      %p273 = pneg %p267
      %p274 = scmp.eq.s32.totalorder %s22, 1
      %p275 = por %p273, %p274
      %p276 = scmp.ne.s32.totalorder %s268, %s271
      %p277 = scmp.eq.s32.totalorder %s22, 0
      %p278 = por %p276, %p277
      %p279 = scmp.ne.s32.totalorder %s268, %s271
      %p280 = scmp.eq.s32.totalorder %s27, 1
      %p281 = por %p279, %p280
      %p282 = scmp.ne.s32.totalorder %s271, %s272
      %p283 = scmp.eq.s32.totalorder %s27, 0
      %p284 = por %p282, %p283
      %p285 = scmp.ne.s32.totalorder %s271, %s272
      %p286 = scmp.eq.s32.totalorder %s28, 1
      %p287 = por %p285, %p286
      %p289 = scmp.ne.s32.totalorder %s272, %s288
      %p290 = scmp.eq.s32.totalorder %s28, 0
      %p291 = por %p289, %p290
      %p292 = scmp.le.s32.totalorder 1, %s22
      %p293 = scmp.lt.s32.totalorder %s22, 3
      %p294 = pnand %p292, %p293
      %p295 = pneg %p294
      // Predicated region
      $region9: #{mlp_forward.1} parent=5 // pred_check
        _
      $region10: #{mlp_forward.1} parent=5 // pred_check_branch
        %297 = sbr.rel (%p294) target = $region12
      $region11: #{mlp_forward.1} parent=5 // pred_region
        %s298 = ssub.s32 %s22, 1
        // Predicated region
        $region13: #{mlp_forward.1} parent=11 // pred_check
          %p299 = pneg %p69
        $region14: #{mlp_forward.1} parent=11 // pred_check_branch
          %301 = sbr.rel (%p299) target = $region16
        $region15: #{mlp_forward.1} parent=11 // pred_region
          _
        $region16: #{mlp_forward.1} parent=11 // pred_fallthru
          _
        // Predicated region
        $region17: #{mlp_forward.1} parent=11 // pred_check
          %p302 = pneg %p90
        $region18: #{mlp_forward.1} parent=11 // pred_check_branch
          %304 = sbr.rel (%p302) target = $region20
        $region19: #{mlp_forward.1} parent=11 // pred_region
          _
        $region20: #{mlp_forward.1} parent=11 // pred_fallthru
          _
        // Predicated region
        $region21: #{mlp_forward.1} parent=11 // pred_check
          %p305 = pneg %p111
        $region22: #{mlp_forward.1} parent=11 // pred_check_branch
          %307 = sbr.rel (%p305) target = $region24
        $region23: #{mlp_forward.1} parent=11 // pred_region
          _
        $region24: #{mlp_forward.1} parent=11 // pred_fallthru
          _
        // Predicated region
        $region25: #{mlp_forward.1} parent=11 // pred_check
          %p308 = pneg %p132
        $region26: #{mlp_forward.1} parent=11 // pred_check_branch
          %310 = sbr.rel (%p308) target = $region28
        $region27: #{mlp_forward.1} parent=11 // pred_region
          _
        $region28: #{mlp_forward.1} parent=11 // pred_fallthru
          _
        // Predicated region
        $region29: #{mlp_forward.1} parent=11 // pred_check
          %p311 = pneg %p153
        $region30: #{mlp_forward.1} parent=11 // pred_check_branch
          %313 = sbr.rel (%p311) target = $region32
        $region31: #{mlp_forward.1} parent=11 // pred_region
          _
        $region32: #{mlp_forward.1} parent=11 // pred_fallthru
          _
        // Predicated region
        $region33: #{mlp_forward.1} parent=11 // pred_check
          %p314 = pneg %p174
        $region34: #{mlp_forward.1} parent=11 // pred_check_branch
          %316 = sbr.rel (%p314) target = $region36
        $region35: #{mlp_forward.1} parent=11 // pred_region
          _
        $region36: #{mlp_forward.1} parent=11 // pred_fallthru
          _
        // Predicated region
        $region37: #{mlp_forward.1} parent=11 // pred_check
          %p317 = pneg %p195
        $region38: #{mlp_forward.1} parent=11 // pred_check_branch
          %319 = sbr.rel (%p317) target = $region40
        $region39: #{mlp_forward.1} parent=11 // pred_region
          _
        $region40: #{mlp_forward.1} parent=11 // pred_fallthru
          _
        // Predicated region
        $region41: #{mlp_forward.1} parent=11 // pred_check
          %p320 = pneg %p216
        $region42: #{mlp_forward.1} parent=11 // pred_check_branch
          %322 = sbr.rel (%p320) target = $region44
        $region43: #{mlp_forward.1} parent=11 // pred_region
          _
        $region44: #{mlp_forward.1} parent=11 // pred_fallthru
          _
        // Predicated region
        $region45: #{mlp_forward.1} parent=11 // pred_check
          %p323 = pneg %p237
        $region46: #{mlp_forward.1} parent=11 // pred_check_branch
          %325 = sbr.rel (%p323) target = $region48
        $region47: #{mlp_forward.1} parent=11 // pred_region
          _
        $region48: #{mlp_forward.1} parent=11 // pred_fallthru
          _
        // Predicated region
        $region49: #{mlp_forward.1} parent=11 // pred_check
          %p326 = pneg %p258
        $region50: #{mlp_forward.1} parent=11 // pred_check_branch
          %328 = sbr.rel (%p326) target = $region52
        $region51: #{mlp_forward.1} parent=11 // pred_region
          _
        $region52: #{mlp_forward.1} parent=11 // pred_fallthru
          _
      $region12: #{mlp_forward.1} parent=5 // pred_fallthru
        _
      %p329 = scmp.lt.s32.totalorder %s22, 2
      // Predicated region
      $region53: #{mlp_forward.1} parent=5 // pred_check
        %p330 = pneg %p329
      $region54: #{mlp_forward.1} parent=5 // pred_check_branch
        %332 = sbr.rel (%p330) target = $region56
      $region55: #{mlp_forward.1} parent=5 // pred_region
        // Predicated region
        $region57: #{mlp_forward.1} parent=55 // pred_check
          %p333 = pneg %p42
        $region58: #{mlp_forward.1} parent=55 // pred_check_branch
          %335 = sbr.rel (%p333) target = $region60
        $region59: #{mlp_forward.1} parent=55 // pred_region
          %s336 = smul.u32 4, %s22
          %p337 = scmp.lt.s32.totalorder %s336, 7
          %s338 = scalar_select %p337, %s336, 7
          %s339 = scalar_lea.vmem %s0, %s338
          %s340 = smul.u32 4, %s22
        $region60: #{mlp_forward.1} parent=55 // pred_fallthru
          _
      $region56: #{mlp_forward.1} parent=5 // pred_fallthru
        _
      %p341 = scmp.le.s32.totalorder 1, %s22
      %p342 = scmp.lt.s32.totalorder %s22, 3
      %p343 = pnand %p341, %p342
      %p344 = pneg %p343
      // Predicated region
      $region61: #{mlp_forward.1} parent=5 // pred_check
        _
      $region62: #{mlp_forward.1} parent=5 // pred_check_branch
        %346 = sbr.rel (%p343) target = $region64
      $region63: #{mlp_forward.1} parent=5 // pred_region
        %s347 = ssub.s32 %s22, 1
        %s348 = smul.u32 4, %s27
        %p349 = scmp.lt.s32.totalorder %s348, 7
        %s350 = scalar_select %p349, %s348, 7
        %s351 = scalar_lea.vmem %s0, %s350
        %p352 = pneg %p48
        %p353 = pneg %p45
        %p354 = pneg %p69
        %p355 = pneg %p66
        %p356 = pneg %p90
        %p357 = pneg %p87
        %p358 = pneg %p111
        %p359 = pneg %p108
        %p360 = pneg %p132
        %p361 = pneg %p129
        %p362 = pneg %p153
        %p363 = pneg %p150
        %p364 = pneg %p174
        %p365 = pneg %p171
        %p366 = pneg %p195
        %p367 = pneg %p192
        %p368 = pneg %p216
        %p369 = pneg %p213
        %p370 = pneg %p237
        %p371 = pneg %p234
        %p372 = pneg %p258
        %p373 = pneg %p255
        %p374 = pneg %p284
        %p375 = pneg %p281
        %s376 = sand.u32 %s271, 1
        %s377 = scalar_lea.sflag [#allocation4], %s376
        %s378 = sand.u32 %s271, 1
        %s379 = smul.addr %s378, 4
        %s380 = scalar_lea.vmem [#allocation3], %s379
        %s381 = smul.u32 4, %s27
        %p382 = scmp.lt.s32.totalorder %s381, 7
        %s383 = scalar_select %p382, %s381, 7
        %s384 = scalar_lea.vmem %s0, %s383
        %s385 = smul.u32 4, %s27
        %s386 = smul.u32 4, %s27
        %v388 = vld [vmem:[%s384] sm:$0xf]
        %v389 = vld [vmem:[%s1] sm:$0xff]
        %v390 = vld [vmem:[%s1 + $0x8] sm:$0xff]
        %v391 = vld [vmem:[%s1 + $0x10] sm:$0xff]
        %v392 = vld [vmem:[%s1 + $0x18] sm:$0xff]
        %394 = vset.pattern.permute.xlu0 0
        %395 = vperm.xlu0 %394, %v389
        %v396 = vpop.permute.xlu0 %395
        %399 = vset.pattern.permute.xlu0 0
        %400 = vperm.xlu0 %399, %v390
        %v401 = vpop.permute.xlu0 %400
        %404 = vset.pattern.permute.xlu0 0
        %405 = vperm.xlu0 %404, %v391
        %v406 = vpop.permute.xlu0 %405
        %409 = vset.pattern.permute.xlu0 0
        %410 = vperm.xlu0 %409, %v392
        %v411 = vpop.permute.xlu0 %410
        %v414 = vperm.slane %v388, 0
        %v415 = vperm.slane %v388, 1
        %v416 = vperm.slane %v388, 2
        %v417 = vperm.slane %v388, 3
        %v422 = vmul.f32 %v396, %v414
        %v423 = vmul.f32 %v396, %v415
        %v424 = vmul.f32 %v396, %v416
        %v425 = vmul.f32 %v396, %v417
        %v426 = vmul.f32 %v401, %v414
        %v427 = vmul.f32 %v401, %v415
        %v428 = vmul.f32 %v401, %v416
        %v429 = vmul.f32 %v401, %v417
        %v430 = vmul.f32 %v406, %v414
        %v431 = vmul.f32 %v406, %v415
        %v432 = vmul.f32 %v406, %v416
        %v433 = vmul.f32 %v406, %v417
        %v434 = vmul.f32 %v411, %v414
        %v435 = vmul.f32 %v411, %v415
        %v436 = vmul.f32 %v411, %v416
        %v437 = vmul.f32 %v411, %v417
        %v438 = vld [vmem:[%s2] sm:$0xff]
        %v439 = vld [vmem:[%s2 + $0x8] sm:$0xff]
        %v440 = vld [vmem:[%s2 + $0x10] sm:$0xff]
        %v441 = vld [vmem:[%s2 + $0x18] sm:$0xff]
        %443 = vset.pattern.permute.xlu0 0
        %444 = vperm.xlu0 %443, %v438
        %v445 = vpop.permute.xlu0 %444
        %448 = vset.pattern.permute.xlu0 0
        %449 = vperm.xlu0 %448, %v439
        %v450 = vpop.permute.xlu0 %449
        %453 = vset.pattern.permute.xlu0 0
        %454 = vperm.xlu0 %453, %v440
        %v455 = vpop.permute.xlu0 %454
        %458 = vset.pattern.permute.xlu0 0
        %459 = vperm.xlu0 %458, %v441
        %v460 = vpop.permute.xlu0 %459
        %v462 = vadd.f32 %v422, %v445
        %v463 = vadd.f32 %v423, %v445
        %v464 = vadd.f32 %v424, %v445
        %v465 = vadd.f32 %v425, %v445
        %v466 = vadd.f32 %v426, %v450
        %v467 = vadd.f32 %v427, %v450
        %v468 = vadd.f32 %v428, %v450
        %v469 = vadd.f32 %v429, %v450
        %v470 = vadd.f32 %v430, %v455
        %v471 = vadd.f32 %v431, %v455
        %v472 = vadd.f32 %v432, %v455
        %v473 = vadd.f32 %v433, %v455
        %v474 = vadd.f32 %v434, %v460
        %v475 = vadd.f32 %v435, %v460
        %v476 = vadd.f32 %v436, %v460
        %v477 = vadd.f32 %v437, %v460
        %v478 = vmax.f32 %v462, 0.0
        %v479 = vmax.f32 %v463, 0.0
        %v480 = vmax.f32 %v464, 0.0
        %v481 = vmax.f32 %v465, 0.0
        %v482 = vmax.f32 %v466, 0.0
        %v483 = vmax.f32 %v467, 0.0
        %v484 = vmax.f32 %v468, 0.0
        %v485 = vmax.f32 %v469, 0.0
        %v486 = vmax.f32 %v470, 0.0
        %v487 = vmax.f32 %v471, 0.0
        %v488 = vmax.f32 %v472, 0.0
        %v489 = vmax.f32 %v473, 0.0
        %v490 = vmax.f32 %v474, 0.0
        %v491 = vmax.f32 %v475, 0.0
        %v492 = vmax.f32 %v476, 0.0
        %v493 = vmax.f32 %v477, 0.0
        %v494 = vpack.c.bf16 %v482, %v478
        %v495 = vpack.c.bf16 %v483, %v479
        %v496 = vpack.c.bf16 %v484, %v480
        %v497 = vpack.c.bf16 %v485, %v481
        %v498 = vpack.c.bf16 %v490, %v486
        %v499 = vpack.c.bf16 %v491, %v487
        %v500 = vpack.c.bf16 %v492, %v488
        %v501 = vpack.c.bf16 %v493, %v489
        %v502 = vld [vmem:[%s3] sm:$0xf]
        %v503 = vld [vmem:[%s3 + $0x4] sm:$0xf]
        %v504 = vld [vmem:[%s3 + $0x8] sm:$0xf]
        %v505 = vld [vmem:[%s3 + $0xc] sm:$0xf]
        %v506 = vld [vmem:[%s3 + $0x10] sm:$0xf]
        %v507 = vld [vmem:[%s3 + $0x14] sm:$0xf]
        %v508 = vld [vmem:[%s3 + $0x18] sm:$0xf]
        %v509 = vld [vmem:[%s3 + $0x1c] sm:$0xf]
        %v510 = vld [vmem:[%s3 + $0x20] sm:$0xf]
        %v511 = vld [vmem:[%s3 + $0x24] sm:$0xf]
        %v512 = vld [vmem:[%s3 + $0x28] sm:$0xf]
        %v513 = vld [vmem:[%s3 + $0x2c] sm:$0xf]
        %v514 = vld [vmem:[%s3 + $0x30] sm:$0xf]
        %v515 = vld [vmem:[%s3 + $0x34] sm:$0xf]
        %v516 = vld [vmem:[%s3 + $0x38] sm:$0xf]
        %v517 = vld [vmem:[%s3 + $0x3c] sm:$0xf]
        %v518 = vld [vmem:[%s4] sm:$0xff]
        %v519 = vld [vmem:[%s4 + $0x8] sm:$0xff]
        %v520 = vld [vmem:[%s4 + $0x10] sm:$0xff]
        %v521 = vld [vmem:[%s4 + $0x18] sm:$0xff]
        %v522 = vld [vmem:[%s4 + $0x20] sm:$0xff]
        %v523 = vld [vmem:[%s4 + $0x28] sm:$0xff]
        %v524 = vld [vmem:[%s4 + $0x30] sm:$0xff]
        %v525 = vld [vmem:[%s4 + $0x38] sm:$0xff]
        %v526 = vld [vmem:[%s4 + $0x40] sm:$0xff]
        %v527 = vld [vmem:[%s4 + $0x48] sm:$0xff]
        %v528 = vld [vmem:[%s4 + $0x50] sm:$0xff]
        %v529 = vld [vmem:[%s4 + $0x58] sm:$0xff]
        %v530 = vld [vmem:[%s4 + $0x60] sm:$0xff]
        %v531 = vld [vmem:[%s4 + $0x68] sm:$0xff]
        %v532 = vld [vmem:[%s4 + $0x70] sm:$0xff]
        %v533 = vld [vmem:[%s4 + $0x78] sm:$0xff]
        %535 = vset.pattern.permute.xlu0 0
        %536 = vperm.xlu0 %535, %v518
        %v537 = vpop.permute.xlu0 %536
        %540 = vset.pattern.permute.xlu0 0
        %541 = vperm.xlu0 %540, %v519
        %v542 = vpop.permute.xlu0 %541
        %545 = vset.pattern.permute.xlu0 0
        %546 = vperm.xlu0 %545, %v520
        %v547 = vpop.permute.xlu0 %546
        %550 = vset.pattern.permute.xlu0 0
        %551 = vperm.xlu0 %550, %v521
        %v552 = vpop.permute.xlu0 %551
        %555 = vset.pattern.permute.xlu0 0
        %556 = vperm.xlu0 %555, %v522
        %v557 = vpop.permute.xlu0 %556
        %560 = vset.pattern.permute.xlu0 0
        %561 = vperm.xlu0 %560, %v523
        %v562 = vpop.permute.xlu0 %561
        %565 = vset.pattern.permute.xlu0 0
        %566 = vperm.xlu0 %565, %v524
        %v567 = vpop.permute.xlu0 %566
        %570 = vset.pattern.permute.xlu0 0
        %571 = vperm.xlu0 %570, %v525
        %v572 = vpop.permute.xlu0 %571
        %575 = vset.pattern.permute.xlu0 0
        %576 = vperm.xlu0 %575, %v526
        %v577 = vpop.permute.xlu0 %576
        %580 = vset.pattern.permute.xlu0 0
        %581 = vperm.xlu0 %580, %v527
        %v582 = vpop.permute.xlu0 %581
        %585 = vset.pattern.permute.xlu0 0
        %586 = vperm.xlu0 %585, %v528
        %v587 = vpop.permute.xlu0 %586
        %590 = vset.pattern.permute.xlu0 0
        %591 = vperm.xlu0 %590, %v529
        %v592 = vpop.permute.xlu0 %591
        %595 = vset.pattern.permute.xlu0 0
        %596 = vperm.xlu0 %595, %v530
        %v597 = vpop.permute.xlu0 %596
        %600 = vset.pattern.permute.xlu0 0
        %601 = vperm.xlu0 %600, %v531
        %v602 = vpop.permute.xlu0 %601
        %605 = vset.pattern.permute.xlu0 0
        %606 = vperm.xlu0 %605, %v532
        %v607 = vpop.permute.xlu0 %606
        %610 = vset.pattern.permute.xlu0 0
        %611 = vperm.xlu0 %610, %v533
        %v612 = vpop.permute.xlu0 %611
        %v630 = vunpack.c.l.b16 %v502
        %v631 = vunpack.c.l.b16 %v503
        %v632 = vunpack.c.l.b16 %v504
        %v633 = vunpack.c.l.b16 %v505
        %v634 = vunpack.c.l.b16 %v506
        %v635 = vunpack.c.l.b16 %v507
        %v636 = vunpack.c.l.b16 %v508
        %v637 = vunpack.c.l.b16 %v509
        %v638 = vunpack.c.l.b16 %v510
        %v639 = vunpack.c.l.b16 %v511
        %v640 = vunpack.c.l.b16 %v512
        %v641 = vunpack.c.l.b16 %v513
        %v642 = vunpack.c.l.b16 %v514
        %v643 = vunpack.c.l.b16 %v515
        %v644 = vunpack.c.l.b16 %v516
        %v645 = vunpack.c.l.b16 %v517
        %v646 = vpack.c.b16 %v631, %v630
        %v647 = vpack.c.b16 %v633, %v632
        %v648 = vpack.c.b16 %v635, %v634
        %v649 = vpack.c.b16 %v637, %v636
        %v650 = vpack.c.b16 %v639, %v638
        %v651 = vpack.c.b16 %v641, %v640
        %v652 = vpack.c.b16 %v643, %v642
        %v653 = vpack.c.b16 %v645, %v644
        %vm654 = vcmask 261120
        %v656 = vsel %vm654, %v646, 0
        %v659 = vsel %vm654, %v647, 0
        %v662 = vsel %vm654, %v648, 0
        %v665 = vsel %vm654, %v649, 0
        %v668 = vsel %vm654, %v650, 0
        %v671 = vsel %vm654, %v651, 0
        %v674 = vsel %vm654, %v652, 0
        %v677 = vsel %vm654, %v653, 0
        %679 = vmatpush.bf16.msra.mxu0 0
        %680 = vmatpush.bf16.msra.mxu0 0
        %681 = vmatpush.bf16.msra.mxu0 0
        %682 = vmatpush.bf16.msra.mxu0 0
        %683 = vmatpush.bf16.msra.mxu0 0
        %684 = vmatpush.bf16.msra.mxu0 0
        %685 = vmatpush.bf16.msra.mxu0 %v498
        %686 = vmatpush.bf16.msra.mxu0 %v494
        %687 = vmatmul.bf16.gmra.mxu0 %v656
        %v688 = vpop.f32.mrf.mxu0
        %v689 = vadd.f32 %v537, %v688
        %v690 = vpop.f32.mrf.mxu0
        %v691 = vadd.f32 %v542, %v690
        %692 = vmatmul.bf16.gmra.mxu0 %v659
        %v693 = vpop.f32.mrf.mxu0
        %v694 = vadd.f32 %v547, %v693
        %v695 = vpop.f32.mrf.mxu0
        %v696 = vadd.f32 %v552, %v695
        %697 = vmatmul.bf16.gmra.mxu0 %v662
        %v698 = vpop.f32.mrf.mxu0
        %v699 = vadd.f32 %v557, %v698
        %v700 = vpop.f32.mrf.mxu0
        %v701 = vadd.f32 %v562, %v700
        %702 = vmatmul.bf16.gmra.mxu0 %v665
        %v703 = vpop.f32.mrf.mxu0
        %v704 = vadd.f32 %v567, %v703
        %v705 = vpop.f32.mrf.mxu0
        %v706 = vadd.f32 %v572, %v705
        %707 = vmatmul.bf16.gmra.mxu0 %v668
        %v708 = vpop.f32.mrf.mxu0
        %v709 = vadd.f32 %v577, %v708
        %v710 = vpop.f32.mrf.mxu0
        %v711 = vadd.f32 %v582, %v710
        %712 = vmatmul.bf16.gmra.mxu0 %v671
        %v713 = vpop.f32.mrf.mxu0
        %v714 = vadd.f32 %v587, %v713
        %v715 = vpop.f32.mrf.mxu0
        %v716 = vadd.f32 %v592, %v715
        %717 = vmatmul.bf16.gmra.mxu0 %v674
        %v718 = vpop.f32.mrf.mxu0
        %v719 = vadd.f32 %v597, %v718
        %v720 = vpop.f32.mrf.mxu0
        %v721 = vadd.f32 %v602, %v720
        %722 = vmatmul.bf16.gmra.mxu0 %v677
        %v723 = vpop.f32.mrf.mxu0
        %v724 = vadd.f32 %v607, %v723
        %v725 = vpop.f32.mrf.mxu0
        %v726 = vadd.f32 %v612, %v725
        %727 = vdwg.mxu0
        %728 = vmatpush.bf16.msra.mxu0 0
        %729 = vmatpush.bf16.msra.mxu0 0
        %730 = vmatpush.bf16.msra.mxu0 0
        %731 = vmatpush.bf16.msra.mxu0 0
        %732 = vmatpush.bf16.msra.mxu0 0
        %733 = vmatpush.bf16.msra.mxu0 0
        %734 = vmatpush.bf16.msra.mxu0 %v499
        %735 = vmatpush.bf16.msra.mxu0 %v495
        %736 = vmatmul.bf16.gmra.mxu0 %v656
        %v737 = vpop.f32.mrf.mxu0
        %v738 = vadd.f32 %v537, %v737
        %v739 = vpop.f32.mrf.mxu0
        %v740 = vadd.f32 %v542, %v739
        %741 = vmatmul.bf16.gmra.mxu0 %v659
        %v742 = vpop.f32.mrf.mxu0
        %v743 = vadd.f32 %v547, %v742
        %v744 = vpop.f32.mrf.mxu0
        %v745 = vadd.f32 %v552, %v744
        %746 = vmatmul.bf16.gmra.mxu0 %v662
        %v747 = vpop.f32.mrf.mxu0
        %v748 = vadd.f32 %v557, %v747
        %v749 = vpop.f32.mrf.mxu0
        %v750 = vadd.f32 %v562, %v749
        %751 = vmatmul.bf16.gmra.mxu0 %v665
        %v752 = vpop.f32.mrf.mxu0
        %v753 = vadd.f32 %v567, %v752
        %v754 = vpop.f32.mrf.mxu0
        %v755 = vadd.f32 %v572, %v754
        %756 = vmatmul.bf16.gmra.mxu0 %v668
        %v757 = vpop.f32.mrf.mxu0
        %v758 = vadd.f32 %v577, %v757
        %v759 = vpop.f32.mrf.mxu0
        %v760 = vadd.f32 %v582, %v759
        %761 = vmatmul.bf16.gmra.mxu0 %v671
        %v762 = vpop.f32.mrf.mxu0
        %v763 = vadd.f32 %v587, %v762
        %v764 = vpop.f32.mrf.mxu0
        %v765 = vadd.f32 %v592, %v764
        %766 = vmatmul.bf16.gmra.mxu0 %v674
        %v767 = vpop.f32.mrf.mxu0
        %v768 = vadd.f32 %v597, %v767
        %v769 = vpop.f32.mrf.mxu0
        %v770 = vadd.f32 %v602, %v769
        %771 = vmatmul.bf16.gmra.mxu0 %v677
        %v772 = vpop.f32.mrf.mxu0
        %v773 = vadd.f32 %v607, %v772
        %v774 = vpop.f32.mrf.mxu0
        %v775 = vadd.f32 %v612, %v774
        %776 = vdwg.mxu0
        %777 = vmatpush.bf16.msra.mxu0 0
        %778 = vmatpush.bf16.msra.mxu0 0
        %779 = vmatpush.bf16.msra.mxu0 0
        %780 = vmatpush.bf16.msra.mxu0 0
        %781 = vmatpush.bf16.msra.mxu0 0
        %782 = vmatpush.bf16.msra.mxu0 0
        %783 = vmatpush.bf16.msra.mxu0 %v500
        %784 = vmatpush.bf16.msra.mxu0 %v496
        %785 = vmatmul.bf16.gmra.mxu0 %v656
        %v786 = vpop.f32.mrf.mxu0
        %v787 = vadd.f32 %v537, %v786
        %v788 = vpop.f32.mrf.mxu0
        %v789 = vadd.f32 %v542, %v788
        %790 = vmatmul.bf16.gmra.mxu0 %v659
        %v791 = vpop.f32.mrf.mxu0
        %v792 = vadd.f32 %v547, %v791
        %v793 = vpop.f32.mrf.mxu0
        %v794 = vadd.f32 %v552, %v793
        %795 = vmatmul.bf16.gmra.mxu0 %v662
        %v796 = vpop.f32.mrf.mxu0
        %v797 = vadd.f32 %v557, %v796
        %v798 = vpop.f32.mrf.mxu0
        %v799 = vadd.f32 %v562, %v798
        %800 = vmatmul.bf16.gmra.mxu0 %v665
        %v801 = vpop.f32.mrf.mxu0
        %v802 = vadd.f32 %v567, %v801
        %v803 = vpop.f32.mrf.mxu0
        %v804 = vadd.f32 %v572, %v803
        %805 = vmatmul.bf16.gmra.mxu0 %v668
        %v806 = vpop.f32.mrf.mxu0
        %v807 = vadd.f32 %v577, %v806
        %v808 = vpop.f32.mrf.mxu0
        %v809 = vadd.f32 %v582, %v808
        %810 = vmatmul.bf16.gmra.mxu0 %v671
        %v811 = vpop.f32.mrf.mxu0
        %v812 = vadd.f32 %v587, %v811
        %v813 = vpop.f32.mrf.mxu0
        %v814 = vadd.f32 %v592, %v813
        %815 = vmatmul.bf16.gmra.mxu0 %v674
        %v816 = vpop.f32.mrf.mxu0
        %v817 = vadd.f32 %v597, %v816
        %v818 = vpop.f32.mrf.mxu0
        %v819 = vadd.f32 %v602, %v818
        %820 = vmatmul.bf16.gmra.mxu0 %v677
        %v821 = vpop.f32.mrf.mxu0
        %v822 = vadd.f32 %v607, %v821
        %v823 = vpop.f32.mrf.mxu0
        %v824 = vadd.f32 %v612, %v823
        %825 = vdwg.mxu0
        %826 = vmatpush.bf16.msra.mxu0 0
        %827 = vmatpush.bf16.msra.mxu0 0
        %828 = vmatpush.bf16.msra.mxu0 0
        %829 = vmatpush.bf16.msra.mxu0 0
        %830 = vmatpush.bf16.msra.mxu0 0
        %831 = vmatpush.bf16.msra.mxu0 0
        %832 = vmatpush.bf16.msra.mxu0 %v501
        %833 = vmatpush.bf16.msra.mxu0 %v497
        %834 = vmatmul.bf16.gmra.mxu0 %v656
        %v835 = vpop.f32.mrf.mxu0
        %v836 = vadd.f32 %v537, %v835
        %v837 = vpop.f32.mrf.mxu0
        %v838 = vadd.f32 %v542, %v837
        %839 = vmatmul.bf16.gmra.mxu0 %v659
        %v840 = vpop.f32.mrf.mxu0
        %v841 = vadd.f32 %v547, %v840
        %v842 = vpop.f32.mrf.mxu0
        %v843 = vadd.f32 %v552, %v842
        %844 = vmatmul.bf16.gmra.mxu0 %v662
        %v845 = vpop.f32.mrf.mxu0
        %v846 = vadd.f32 %v557, %v845
        %v847 = vpop.f32.mrf.mxu0
        %v848 = vadd.f32 %v562, %v847
        %849 = vmatmul.bf16.gmra.mxu0 %v665
        %v850 = vpop.f32.mrf.mxu0
        %v851 = vadd.f32 %v567, %v850
        %v852 = vpop.f32.mrf.mxu0
        %v853 = vadd.f32 %v572, %v852
        %854 = vmatmul.bf16.gmra.mxu0 %v668
        %v855 = vpop.f32.mrf.mxu0
        %v856 = vadd.f32 %v577, %v855
        %v857 = vpop.f32.mrf.mxu0
        %v858 = vadd.f32 %v582, %v857
        %859 = vmatmul.bf16.gmra.mxu0 %v671
        %v860 = vpop.f32.mrf.mxu0
        %v861 = vadd.f32 %v587, %v860
        %v862 = vpop.f32.mrf.mxu0
        %v863 = vadd.f32 %v592, %v862
        %864 = vmatmul.bf16.gmra.mxu0 %v674
        %v865 = vpop.f32.mrf.mxu0
        %v866 = vadd.f32 %v597, %v865
        %v867 = vpop.f32.mrf.mxu0
        %v868 = vadd.f32 %v602, %v867
        %869 = vmatmul.bf16.gmra.mxu0 %v677
        %v870 = vpop.f32.mrf.mxu0
        %v871 = vadd.f32 %v607, %v870
        %v872 = vpop.f32.mrf.mxu0
        %v873 = vadd.f32 %v612, %v872
        %874 = vdwg.mxu0
        %v875 = vmax.f32 %v689, 0.0
        %v876 = vmax.f32 %v738, 0.0
        %v877 = vmax.f32 %v787, 0.0
        %v878 = vmax.f32 %v836, 0.0
        %v879 = vmax.f32 %v691, 0.0
        %v880 = vmax.f32 %v740, 0.0
        %v881 = vmax.f32 %v789, 0.0
        %v882 = vmax.f32 %v838, 0.0
        %v883 = vmax.f32 %v694, 0.0
        %v884 = vmax.f32 %v743, 0.0
        %v885 = vmax.f32 %v792, 0.0
        %v886 = vmax.f32 %v841, 0.0
        %v887 = vmax.f32 %v696, 0.0
        %v888 = vmax.f32 %v745, 0.0
        %v889 = vmax.f32 %v794, 0.0
        %v890 = vmax.f32 %v843, 0.0
        %v891 = vmax.f32 %v699, 0.0
        %v892 = vmax.f32 %v748, 0.0
        %v893 = vmax.f32 %v797, 0.0
        %v894 = vmax.f32 %v846, 0.0
        %v895 = vmax.f32 %v701, 0.0
        %v896 = vmax.f32 %v750, 0.0
        %v897 = vmax.f32 %v799, 0.0
        %v898 = vmax.f32 %v848, 0.0
        %v899 = vmax.f32 %v704, 0.0
        %v900 = vmax.f32 %v753, 0.0
        %v901 = vmax.f32 %v802, 0.0
        %v902 = vmax.f32 %v851, 0.0
        %v903 = vmax.f32 %v706, 0.0
        %v904 = vmax.f32 %v755, 0.0
        %v905 = vmax.f32 %v804, 0.0
        %v906 = vmax.f32 %v853, 0.0
        %v907 = vmax.f32 %v709, 0.0
        %v908 = vmax.f32 %v758, 0.0
        %v909 = vmax.f32 %v807, 0.0
        %v910 = vmax.f32 %v856, 0.0
        %v911 = vmax.f32 %v711, 0.0
        %v912 = vmax.f32 %v760, 0.0
        %v913 = vmax.f32 %v809, 0.0
        %v914 = vmax.f32 %v858, 0.0
        %v915 = vmax.f32 %v714, 0.0
        %v916 = vmax.f32 %v763, 0.0
        %v917 = vmax.f32 %v812, 0.0
        %v918 = vmax.f32 %v861, 0.0
        %v919 = vmax.f32 %v716, 0.0
        %v920 = vmax.f32 %v765, 0.0
        %v921 = vmax.f32 %v814, 0.0
        %v922 = vmax.f32 %v863, 0.0
        %v923 = vmax.f32 %v719, 0.0
        %v924 = vmax.f32 %v768, 0.0
        %v925 = vmax.f32 %v817, 0.0
        %v926 = vmax.f32 %v866, 0.0
        %v927 = vmax.f32 %v721, 0.0
        %v928 = vmax.f32 %v770, 0.0
        %v929 = vmax.f32 %v819, 0.0
        %v930 = vmax.f32 %v868, 0.0
        %v931 = vmax.f32 %v724, 0.0
        %v932 = vmax.f32 %v773, 0.0
        %v933 = vmax.f32 %v822, 0.0
        %v934 = vmax.f32 %v871, 0.0
        %v935 = vmax.f32 %v726, 0.0
        %v936 = vmax.f32 %v775, 0.0
        %v937 = vmax.f32 %v824, 0.0
        %v938 = vmax.f32 %v873, 0.0
        %v939 = vpack.c.bf16 %v879, %v875
        %v940 = vpack.c.bf16 %v880, %v876
        %v941 = vpack.c.bf16 %v881, %v877
        %v942 = vpack.c.bf16 %v882, %v878
        %v943 = vpack.c.bf16 %v887, %v883
        %v944 = vpack.c.bf16 %v888, %v884
        %v945 = vpack.c.bf16 %v889, %v885
        %v946 = vpack.c.bf16 %v890, %v886
        %v947 = vpack.c.bf16 %v895, %v891
        %v948 = vpack.c.bf16 %v896, %v892
        %v949 = vpack.c.bf16 %v897, %v893
        %v950 = vpack.c.bf16 %v898, %v894
        %v951 = vpack.c.bf16 %v903, %v899
        %v952 = vpack.c.bf16 %v904, %v900
        %v953 = vpack.c.bf16 %v905, %v901
        %v954 = vpack.c.bf16 %v906, %v902
        %v955 = vpack.c.bf16 %v911, %v907
        %v956 = vpack.c.bf16 %v912, %v908
        %v957 = vpack.c.bf16 %v913, %v909
        %v958 = vpack.c.bf16 %v914, %v910
        %v959 = vpack.c.bf16 %v919, %v915
        %v960 = vpack.c.bf16 %v920, %v916
        %v961 = vpack.c.bf16 %v921, %v917
        %v962 = vpack.c.bf16 %v922, %v918
        %v963 = vpack.c.bf16 %v927, %v923
        %v964 = vpack.c.bf16 %v928, %v924
        %v965 = vpack.c.bf16 %v929, %v925
        %v966 = vpack.c.bf16 %v930, %v926
        %v967 = vpack.c.bf16 %v935, %v931
        %v968 = vpack.c.bf16 %v936, %v932
        %v969 = vpack.c.bf16 %v937, %v933
        %v970 = vpack.c.bf16 %v938, %v934
        %v971 = vld [vmem:[%s5] sm:$0xf]
        %v972 = vld [vmem:[%s5 + $0x4] sm:$0xf]
        %v973 = vld [vmem:[%s5 + $0x8] sm:$0xf]
        %v974 = vld [vmem:[%s5 + $0xc] sm:$0xf]
        %v975 = vld [vmem:[%s5 + $0x10] sm:$0xf]
        %v976 = vld [vmem:[%s5 + $0x14] sm:$0xf]
        %v977 = vld [vmem:[%s5 + $0x18] sm:$0xf]
        %v978 = vld [vmem:[%s5 + $0x1c] sm:$0xf]
        %v979 = vld [vmem:[%s5 + $0x20] sm:$0xf]
        %v980 = vld [vmem:[%s5 + $0x24] sm:$0xf]
        %v981 = vld [vmem:[%s5 + $0x28] sm:$0xf]
        %v982 = vld [vmem:[%s5 + $0x2c] sm:$0xf]
        %v983 = vld [vmem:[%s5 + $0x30] sm:$0xf]
        %v984 = vld [vmem:[%s5 + $0x34] sm:$0xf]
        %v985 = vld [vmem:[%s5 + $0x38] sm:$0xf]
        %v986 = vld [vmem:[%s5 + $0x3c] sm:$0xf]
        %v987 = vld [vmem:[%s6] sm:$0xff]
        %v988 = vld [vmem:[%s6 + $0x8] sm:$0xff]
        %v989 = vld [vmem:[%s6 + $0x10] sm:$0xff]
        %v990 = vld [vmem:[%s6 + $0x18] sm:$0xff]
        %v991 = vld [vmem:[%s6 + $0x20] sm:$0xff]
        %v992 = vld [vmem:[%s6 + $0x28] sm:$0xff]
        %v993 = vld [vmem:[%s6 + $0x30] sm:$0xff]
        %v994 = vld [vmem:[%s6 + $0x38] sm:$0xff]
        %v995 = vld [vmem:[%s6 + $0x40] sm:$0xff]
        %v996 = vld [vmem:[%s6 + $0x48] sm:$0xff]
        %v997 = vld [vmem:[%s6 + $0x50] sm:$0xff]
        %v998 = vld [vmem:[%s6 + $0x58] sm:$0xff]
        %v999 = vld [vmem:[%s6 + $0x60] sm:$0xff]
        %v1000 = vld [vmem:[%s6 + $0x68] sm:$0xff]
        %v1001 = vld [vmem:[%s6 + $0x70] sm:$0xff]
        %v1002 = vld [vmem:[%s6 + $0x78] sm:$0xff]
        %1004 = vset.pattern.permute.xlu0 0
        %1005 = vperm.xlu0 %1004, %v987
        %v1006 = vpop.permute.xlu0 %1005
        %1009 = vset.pattern.permute.xlu0 0
        %1010 = vperm.xlu0 %1009, %v988
        %v1011 = vpop.permute.xlu0 %1010
        %1014 = vset.pattern.permute.xlu0 0
        %1015 = vperm.xlu0 %1014, %v989
        %v1016 = vpop.permute.xlu0 %1015
        %1019 = vset.pattern.permute.xlu0 0
        %1020 = vperm.xlu0 %1019, %v990
        %v1021 = vpop.permute.xlu0 %1020
        %1024 = vset.pattern.permute.xlu0 0
        %1025 = vperm.xlu0 %1024, %v991
        %v1026 = vpop.permute.xlu0 %1025
        %1029 = vset.pattern.permute.xlu0 0
        %1030 = vperm.xlu0 %1029, %v992
        %v1031 = vpop.permute.xlu0 %1030
        %1034 = vset.pattern.permute.xlu0 0
        %1035 = vperm.xlu0 %1034, %v993
        %v1036 = vpop.permute.xlu0 %1035
        %1039 = vset.pattern.permute.xlu0 0
        %1040 = vperm.xlu0 %1039, %v994
        %v1041 = vpop.permute.xlu0 %1040
        %1044 = vset.pattern.permute.xlu0 0
        %1045 = vperm.xlu0 %1044, %v995
        %v1046 = vpop.permute.xlu0 %1045
        %1049 = vset.pattern.permute.xlu0 0
        %1050 = vperm.xlu0 %1049, %v996
        %v1051 = vpop.permute.xlu0 %1050
        %1054 = vset.pattern.permute.xlu0 0
        %1055 = vperm.xlu0 %1054, %v997
        %v1056 = vpop.permute.xlu0 %1055
        %1059 = vset.pattern.permute.xlu0 0
        %1060 = vperm.xlu0 %1059, %v998
        %v1061 = vpop.permute.xlu0 %1060
        %1064 = vset.pattern.permute.xlu0 0
        %1065 = vperm.xlu0 %1064, %v999
        %v1066 = vpop.permute.xlu0 %1065
        %1069 = vset.pattern.permute.xlu0 0
        %1070 = vperm.xlu0 %1069, %v1000
        %v1071 = vpop.permute.xlu0 %1070
        %1074 = vset.pattern.permute.xlu0 0
        %1075 = vperm.xlu0 %1074, %v1001
        %v1076 = vpop.permute.xlu0 %1075
        %1079 = vset.pattern.permute.xlu0 0
        %1080 = vperm.xlu0 %1079, %v1002
        %v1081 = vpop.permute.xlu0 %1080
        %v1099 = vunpack.c.l.b16 %v971
        %v1100 = vunpack.c.l.b16 %v972
        %v1101 = vunpack.c.l.b16 %v973
        %v1102 = vunpack.c.l.b16 %v974
        %v1103 = vunpack.c.l.b16 %v975
        %v1104 = vunpack.c.l.b16 %v976
        %v1105 = vunpack.c.l.b16 %v977
        %v1106 = vunpack.c.l.b16 %v978
        %v1107 = vunpack.c.l.b16 %v979
        %v1108 = vunpack.c.l.b16 %v980
        %v1109 = vunpack.c.l.b16 %v981
        %v1110 = vunpack.c.l.b16 %v982
        %v1111 = vunpack.c.l.b16 %v983
        %v1112 = vunpack.c.l.b16 %v984
        %v1113 = vunpack.c.l.b16 %v985
        %v1114 = vunpack.c.l.b16 %v986
        %v1115 = vpack.c.b16 %v1100, %v1099
        %v1116 = vpack.c.b16 %v1102, %v1101
        %v1117 = vpack.c.b16 %v1104, %v1103
        %v1118 = vpack.c.b16 %v1106, %v1105
        %v1119 = vpack.c.b16 %v1108, %v1107
        %v1120 = vpack.c.b16 %v1110, %v1109
        %v1121 = vpack.c.b16 %v1112, %v1111
        %v1122 = vpack.c.b16 %v1114, %v1113
        %1131 = vmatpush.bf16.msra.mxu0 %v967
        %1132 = vmatpush.bf16.msra.mxu0 %v963
        %1133 = vmatpush.bf16.msra.mxu0 %v959
        %1134 = vmatpush.bf16.msra.mxu0 %v955
        %1135 = vmatpush.bf16.msra.mxu0 %v951
        %1136 = vmatpush.bf16.msra.mxu0 %v947
        %1137 = vmatpush.bf16.msra.mxu0 %v943
        %1138 = vmatpush.bf16.msra.mxu0 %v939
        %1139 = vmatmul.bf16.gmra.mxu0 %v1115
        %v1140 = vpop.f32.mrf.mxu0
        %v1141 = vadd.f32 %v1006, %v1140
        %v1142 = vpop.f32.mrf.mxu0
        %v1143 = vadd.f32 %v1011, %v1142
        %1144 = vmatmul.bf16.gmra.mxu0 %v1116
        %v1145 = vpop.f32.mrf.mxu0
        %v1146 = vadd.f32 %v1016, %v1145
        %v1147 = vpop.f32.mrf.mxu0
        %v1148 = vadd.f32 %v1021, %v1147
        %1149 = vmatmul.bf16.gmra.mxu0 %v1117
        %v1150 = vpop.f32.mrf.mxu0
        %v1151 = vadd.f32 %v1026, %v1150
        %v1152 = vpop.f32.mrf.mxu0
        %v1153 = vadd.f32 %v1031, %v1152
        %1154 = vmatmul.bf16.gmra.mxu0 %v1118
        %v1155 = vpop.f32.mrf.mxu0
        %v1156 = vadd.f32 %v1036, %v1155
        %v1157 = vpop.f32.mrf.mxu0
        %v1158 = vadd.f32 %v1041, %v1157
        %1159 = vmatmul.bf16.gmra.mxu0 %v1119
        %v1160 = vpop.f32.mrf.mxu0
        %v1161 = vadd.f32 %v1046, %v1160
        %v1162 = vpop.f32.mrf.mxu0
        %v1163 = vadd.f32 %v1051, %v1162
        %1164 = vmatmul.bf16.gmra.mxu0 %v1120
        %v1165 = vpop.f32.mrf.mxu0
        %v1166 = vadd.f32 %v1056, %v1165
        %v1167 = vpop.f32.mrf.mxu0
        %v1168 = vadd.f32 %v1061, %v1167
        %1169 = vmatmul.bf16.gmra.mxu0 %v1121
        %v1170 = vpop.f32.mrf.mxu0
        %v1171 = vadd.f32 %v1066, %v1170
        %v1172 = vpop.f32.mrf.mxu0
        %v1173 = vadd.f32 %v1071, %v1172
        %1174 = vmatmul.bf16.gmra.mxu0 %v1122
        %v1175 = vpop.f32.mrf.mxu0
        %v1176 = vadd.f32 %v1076, %v1175
        %v1177 = vpop.f32.mrf.mxu0
        %v1178 = vadd.f32 %v1081, %v1177
        %1179 = vdwg.mxu0
        %1180 = vmatpush.bf16.msra.mxu0 %v968
        %1181 = vmatpush.bf16.msra.mxu0 %v964
        %1182 = vmatpush.bf16.msra.mxu0 %v960
        %1183 = vmatpush.bf16.msra.mxu0 %v956
        %1184 = vmatpush.bf16.msra.mxu0 %v952
        %1185 = vmatpush.bf16.msra.mxu0 %v948
        %1186 = vmatpush.bf16.msra.mxu0 %v944
        %1187 = vmatpush.bf16.msra.mxu0 %v940
        %1188 = vmatmul.bf16.gmra.mxu0 %v1115
        %v1189 = vpop.f32.mrf.mxu0
        %v1190 = vadd.f32 %v1006, %v1189
        %v1191 = vpop.f32.mrf.mxu0
        %v1192 = vadd.f32 %v1011, %v1191
        %1193 = vmatmul.bf16.gmra.mxu0 %v1116
        %v1194 = vpop.f32.mrf.mxu0
        %v1195 = vadd.f32 %v1016, %v1194
        %v1196 = vpop.f32.mrf.mxu0
        %v1197 = vadd.f32 %v1021, %v1196
        %1198 = vmatmul.bf16.gmra.mxu0 %v1117
        %v1199 = vpop.f32.mrf.mxu0
        %v1200 = vadd.f32 %v1026, %v1199
        %v1201 = vpop.f32.mrf.mxu0
        %v1202 = vadd.f32 %v1031, %v1201
        %1203 = vmatmul.bf16.gmra.mxu0 %v1118
        %v1204 = vpop.f32.mrf.mxu0
        %v1205 = vadd.f32 %v1036, %v1204
        %v1206 = vpop.f32.mrf.mxu0
        %v1207 = vadd.f32 %v1041, %v1206
        %1208 = vmatmul.bf16.gmra.mxu0 %v1119
        %v1209 = vpop.f32.mrf.mxu0
        %v1210 = vadd.f32 %v1046, %v1209
        %v1211 = vpop.f32.mrf.mxu0
        %v1212 = vadd.f32 %v1051, %v1211
        %1213 = vmatmul.bf16.gmra.mxu0 %v1120
        %v1214 = vpop.f32.mrf.mxu0
        %v1215 = vadd.f32 %v1056, %v1214
        %v1216 = vpop.f32.mrf.mxu0
        %v1217 = vadd.f32 %v1061, %v1216
        %1218 = vmatmul.bf16.gmra.mxu0 %v1121
        %v1219 = vpop.f32.mrf.mxu0
        %v1220 = vadd.f32 %v1066, %v1219
        %v1221 = vpop.f32.mrf.mxu0
        %v1222 = vadd.f32 %v1071, %v1221
        %1223 = vmatmul.bf16.gmra.mxu0 %v1122
        %v1224 = vpop.f32.mrf.mxu0
        %v1225 = vadd.f32 %v1076, %v1224
        %v1226 = vpop.f32.mrf.mxu0
        %v1227 = vadd.f32 %v1081, %v1226
        %1228 = vdwg.mxu0
        %1229 = vmatpush.bf16.msra.mxu0 %v969
        %1230 = vmatpush.bf16.msra.mxu0 %v965
        %1231 = vmatpush.bf16.msra.mxu0 %v961
        %1232 = vmatpush.bf16.msra.mxu0 %v957
        %1233 = vmatpush.bf16.msra.mxu0 %v953
        %1234 = vmatpush.bf16.msra.mxu0 %v949
        %1235 = vmatpush.bf16.msra.mxu0 %v945
        %1236 = vmatpush.bf16.msra.mxu0 %v941
        %1237 = vmatmul.bf16.gmra.mxu0 %v1115
        %v1238 = vpop.f32.mrf.mxu0
        %v1239 = vadd.f32 %v1006, %v1238
        %v1240 = vpop.f32.mrf.mxu0
        %v1241 = vadd.f32 %v1011, %v1240
        %1242 = vmatmul.bf16.gmra.mxu0 %v1116
        %v1243 = vpop.f32.mrf.mxu0
        %v1244 = vadd.f32 %v1016, %v1243
        %v1245 = vpop.f32.mrf.mxu0
        %v1246 = vadd.f32 %v1021, %v1245
        %1247 = vmatmul.bf16.gmra.mxu0 %v1117
        %v1248 = vpop.f32.mrf.mxu0
        %v1249 = vadd.f32 %v1026, %v1248
        %v1250 = vpop.f32.mrf.mxu0
        %v1251 = vadd.f32 %v1031, %v1250
        %1252 = vmatmul.bf16.gmra.mxu0 %v1118
        %v1253 = vpop.f32.mrf.mxu0
        %v1254 = vadd.f32 %v1036, %v1253
        %v1255 = vpop.f32.mrf.mxu0
        %v1256 = vadd.f32 %v1041, %v1255
        %1257 = vmatmul.bf16.gmra.mxu0 %v1119
        %v1258 = vpop.f32.mrf.mxu0
        %v1259 = vadd.f32 %v1046, %v1258
        %v1260 = vpop.f32.mrf.mxu0
        %v1261 = vadd.f32 %v1051, %v1260
        %1262 = vmatmul.bf16.gmra.mxu0 %v1120
        %v1263 = vpop.f32.mrf.mxu0
        %v1264 = vadd.f32 %v1056, %v1263
        %v1265 = vpop.f32.mrf.mxu0
        %v1266 = vadd.f32 %v1061, %v1265
        %1267 = vmatmul.bf16.gmra.mxu0 %v1121
        %v1268 = vpop.f32.mrf.mxu0
        %v1269 = vadd.f32 %v1066, %v1268
        %v1270 = vpop.f32.mrf.mxu0
        %v1271 = vadd.f32 %v1071, %v1270
        %1272 = vmatmul.bf16.gmra.mxu0 %v1122
        %v1273 = vpop.f32.mrf.mxu0
        %v1274 = vadd.f32 %v1076, %v1273
        %v1275 = vpop.f32.mrf.mxu0
        %v1276 = vadd.f32 %v1081, %v1275
        %1277 = vdwg.mxu0
        %1278 = vmatpush.bf16.msra.mxu0 %v970
        %1279 = vmatpush.bf16.msra.mxu0 %v966
        %1280 = vmatpush.bf16.msra.mxu0 %v962
        %1281 = vmatpush.bf16.msra.mxu0 %v958
        %1282 = vmatpush.bf16.msra.mxu0 %v954
        %1283 = vmatpush.bf16.msra.mxu0 %v950
        %1284 = vmatpush.bf16.msra.mxu0 %v946
        %1285 = vmatpush.bf16.msra.mxu0 %v942
        %1286 = vmatmul.bf16.gmra.mxu0 %v1115
        %v1287 = vpop.f32.mrf.mxu0
        %v1288 = vadd.f32 %v1006, %v1287
        %v1289 = vpop.f32.mrf.mxu0
        %v1290 = vadd.f32 %v1011, %v1289
        %1291 = vmatmul.bf16.gmra.mxu0 %v1116
        %v1292 = vpop.f32.mrf.mxu0
        %v1293 = vadd.f32 %v1016, %v1292
        %v1294 = vpop.f32.mrf.mxu0
        %v1295 = vadd.f32 %v1021, %v1294
        %1296 = vmatmul.bf16.gmra.mxu0 %v1117
        %v1297 = vpop.f32.mrf.mxu0
        %v1298 = vadd.f32 %v1026, %v1297
        %v1299 = vpop.f32.mrf.mxu0
        %v1300 = vadd.f32 %v1031, %v1299
        %1301 = vmatmul.bf16.gmra.mxu0 %v1118
        %v1302 = vpop.f32.mrf.mxu0
        %v1303 = vadd.f32 %v1036, %v1302
        %v1304 = vpop.f32.mrf.mxu0
        %v1305 = vadd.f32 %v1041, %v1304
        %1306 = vmatmul.bf16.gmra.mxu0 %v1119
        %v1307 = vpop.f32.mrf.mxu0
        %v1308 = vadd.f32 %v1046, %v1307
        %v1309 = vpop.f32.mrf.mxu0
        %v1310 = vadd.f32 %v1051, %v1309
        %1311 = vmatmul.bf16.gmra.mxu0 %v1120
        %v1312 = vpop.f32.mrf.mxu0
        %v1313 = vadd.f32 %v1056, %v1312
        %v1314 = vpop.f32.mrf.mxu0
        %v1315 = vadd.f32 %v1061, %v1314
        %1316 = vmatmul.bf16.gmra.mxu0 %v1121
        %v1317 = vpop.f32.mrf.mxu0
        %v1318 = vadd.f32 %v1066, %v1317
        %v1319 = vpop.f32.mrf.mxu0
        %v1320 = vadd.f32 %v1071, %v1319
        %1321 = vmatmul.bf16.gmra.mxu0 %v1122
        %v1322 = vpop.f32.mrf.mxu0
        %v1323 = vadd.f32 %v1076, %v1322
        %v1324 = vpop.f32.mrf.mxu0
        %v1325 = vadd.f32 %v1081, %v1324
        %1326 = vdwg.mxu0
        %v1327 = vmax.f32 %v1141, 0.0
        %v1328 = vmax.f32 %v1190, 0.0
        %v1329 = vmax.f32 %v1239, 0.0
        %v1330 = vmax.f32 %v1288, 0.0
        %v1331 = vmax.f32 %v1143, 0.0
        %v1332 = vmax.f32 %v1192, 0.0
        %v1333 = vmax.f32 %v1241, 0.0
        %v1334 = vmax.f32 %v1290, 0.0
        %v1335 = vmax.f32 %v1146, 0.0
        %v1336 = vmax.f32 %v1195, 0.0
        %v1337 = vmax.f32 %v1244, 0.0
        %v1338 = vmax.f32 %v1293, 0.0
        %v1339 = vmax.f32 %v1148, 0.0
        %v1340 = vmax.f32 %v1197, 0.0
        %v1341 = vmax.f32 %v1246, 0.0
        %v1342 = vmax.f32 %v1295, 0.0
        %v1343 = vmax.f32 %v1151, 0.0
        %v1344 = vmax.f32 %v1200, 0.0
        %v1345 = vmax.f32 %v1249, 0.0
        %v1346 = vmax.f32 %v1298, 0.0
        %v1347 = vmax.f32 %v1153, 0.0
        %v1348 = vmax.f32 %v1202, 0.0
        %v1349 = vmax.f32 %v1251, 0.0
        %v1350 = vmax.f32 %v1300, 0.0
        %v1351 = vmax.f32 %v1156, 0.0
        %v1352 = vmax.f32 %v1205, 0.0
        %v1353 = vmax.f32 %v1254, 0.0
        %v1354 = vmax.f32 %v1303, 0.0
        %v1355 = vmax.f32 %v1158, 0.0
        %v1356 = vmax.f32 %v1207, 0.0
        %v1357 = vmax.f32 %v1256, 0.0
        %v1358 = vmax.f32 %v1305, 0.0
        %v1359 = vmax.f32 %v1161, 0.0
        %v1360 = vmax.f32 %v1210, 0.0
        %v1361 = vmax.f32 %v1259, 0.0
        %v1362 = vmax.f32 %v1308, 0.0
        %v1363 = vmax.f32 %v1163, 0.0
        %v1364 = vmax.f32 %v1212, 0.0
        %v1365 = vmax.f32 %v1261, 0.0
        %v1366 = vmax.f32 %v1310, 0.0
        %v1367 = vmax.f32 %v1166, 0.0
        %v1368 = vmax.f32 %v1215, 0.0
        %v1369 = vmax.f32 %v1264, 0.0
        %v1370 = vmax.f32 %v1313, 0.0
        %v1371 = vmax.f32 %v1168, 0.0
        %v1372 = vmax.f32 %v1217, 0.0
        %v1373 = vmax.f32 %v1266, 0.0
        %v1374 = vmax.f32 %v1315, 0.0
        %v1375 = vmax.f32 %v1171, 0.0
        %v1376 = vmax.f32 %v1220, 0.0
        %v1377 = vmax.f32 %v1269, 0.0
        %v1378 = vmax.f32 %v1318, 0.0
        %v1379 = vmax.f32 %v1173, 0.0
        %v1380 = vmax.f32 %v1222, 0.0
        %v1381 = vmax.f32 %v1271, 0.0
        %v1382 = vmax.f32 %v1320, 0.0
        %v1383 = vmax.f32 %v1176, 0.0
        %v1384 = vmax.f32 %v1225, 0.0
        %v1385 = vmax.f32 %v1274, 0.0
        %v1386 = vmax.f32 %v1323, 0.0
        %v1387 = vmax.f32 %v1178, 0.0
        %v1388 = vmax.f32 %v1227, 0.0
        %v1389 = vmax.f32 %v1276, 0.0
        %v1390 = vmax.f32 %v1325, 0.0
        %v1391 = vpack.c.bf16 %v1331, %v1327
        %v1392 = vpack.c.bf16 %v1332, %v1328
        %v1393 = vpack.c.bf16 %v1333, %v1329
        %v1394 = vpack.c.bf16 %v1334, %v1330
        %v1395 = vpack.c.bf16 %v1339, %v1335
        %v1396 = vpack.c.bf16 %v1340, %v1336
        %v1397 = vpack.c.bf16 %v1341, %v1337
        %v1398 = vpack.c.bf16 %v1342, %v1338
        %v1399 = vpack.c.bf16 %v1347, %v1343
        %v1400 = vpack.c.bf16 %v1348, %v1344
        %v1401 = vpack.c.bf16 %v1349, %v1345
        %v1402 = vpack.c.bf16 %v1350, %v1346
        %v1403 = vpack.c.bf16 %v1355, %v1351
        %v1404 = vpack.c.bf16 %v1356, %v1352
        %v1405 = vpack.c.bf16 %v1357, %v1353
        %v1406 = vpack.c.bf16 %v1358, %v1354
        %v1407 = vpack.c.bf16 %v1363, %v1359
        %v1408 = vpack.c.bf16 %v1364, %v1360
        %v1409 = vpack.c.bf16 %v1365, %v1361
        %v1410 = vpack.c.bf16 %v1366, %v1362
        %v1411 = vpack.c.bf16 %v1371, %v1367
        %v1412 = vpack.c.bf16 %v1372, %v1368
        %v1413 = vpack.c.bf16 %v1373, %v1369
        %v1414 = vpack.c.bf16 %v1374, %v1370
        %v1415 = vpack.c.bf16 %v1379, %v1375
        %v1416 = vpack.c.bf16 %v1380, %v1376
        %v1417 = vpack.c.bf16 %v1381, %v1377
        %v1418 = vpack.c.bf16 %v1382, %v1378
        %v1419 = vpack.c.bf16 %v1387, %v1383
        %v1420 = vpack.c.bf16 %v1388, %v1384
        %v1421 = vpack.c.bf16 %v1389, %v1385
        %v1422 = vpack.c.bf16 %v1390, %v1386
        %v1423 = vld [vmem:[%s7] sm:$0xf]
        %v1424 = vld [vmem:[%s7 + $0x4] sm:$0xf]
        %v1425 = vld [vmem:[%s7 + $0x8] sm:$0xf]
        %v1426 = vld [vmem:[%s7 + $0xc] sm:$0xf]
        %v1427 = vld [vmem:[%s8] sm:$0xff]
        %v1428 = vld [vmem:[%s8 + $0x8] sm:$0xff]
        %v1429 = vld [vmem:[%s8 + $0x10] sm:$0xff]
        %v1430 = vld [vmem:[%s8 + $0x18] sm:$0xff]
        %1432 = vset.pattern.permute.xlu0 0
        %1433 = vperm.xlu0 %1432, %v1427
        %v1434 = vpop.permute.xlu0 %1433
        %1437 = vset.pattern.permute.xlu0 0
        %1438 = vperm.xlu0 %1437, %v1428
        %v1439 = vpop.permute.xlu0 %1438
        %1442 = vset.pattern.permute.xlu0 0
        %1443 = vperm.xlu0 %1442, %v1429
        %v1444 = vpop.permute.xlu0 %1443
        %1447 = vset.pattern.permute.xlu0 0
        %1448 = vperm.xlu0 %1447, %v1430
        %v1449 = vpop.permute.xlu0 %1448
        %v1455 = vunpack.c.l.b16 %v1423
        %v1456 = vunpack.c.l.b16 %v1424
        %v1457 = vunpack.c.l.b16 %v1425
        %v1458 = vunpack.c.l.b16 %v1426
        %v1459 = vpack.c.b16 %v1456, %v1455
        %v1460 = vpack.c.b16 %v1458, %v1457
        %1463 = vmatpush.bf16.msra.mxu0 %v1419
        %1464 = vmatpush.bf16.msra.mxu0 %v1415
        %1465 = vmatpush.bf16.msra.mxu0 %v1411
        %1466 = vmatpush.bf16.msra.mxu0 %v1407
        %1467 = vmatpush.bf16.msra.mxu0 %v1403
        %1468 = vmatpush.bf16.msra.mxu0 %v1399
        %1469 = vmatpush.bf16.msra.mxu0 %v1395
        %1470 = vmatpush.bf16.msra.mxu0 %v1391
        %1471 = vmatmul.bf16.gmra.mxu0 %v1459
        %v1472 = vpop.f32.mrf.mxu0
        %v1473 = vadd.f32 %v1434, %v1472
        %v1474 = vpop.f32.mrf.mxu0
        %v1475 = vadd.f32 %v1439, %v1474
        %1476 = vmatmul.bf16.gmra.mxu0 %v1460
        %v1477 = vpop.f32.mrf.mxu0
        %v1478 = vadd.f32 %v1444, %v1477
        %v1479 = vpop.f32.mrf.mxu0
        %v1480 = vadd.f32 %v1449, %v1479
        %1481 = vdwg.mxu0
        %1482 = vmatpush.bf16.msra.mxu0 %v1420
        %1483 = vmatpush.bf16.msra.mxu0 %v1416
        %1484 = vmatpush.bf16.msra.mxu0 %v1412
        %1485 = vmatpush.bf16.msra.mxu0 %v1408
        %1486 = vmatpush.bf16.msra.mxu0 %v1404
        %1487 = vmatpush.bf16.msra.mxu0 %v1400
        %1488 = vmatpush.bf16.msra.mxu0 %v1396
        %1489 = vmatpush.bf16.msra.mxu0 %v1392
        %1490 = vmatmul.bf16.gmra.mxu0 %v1459
        %v1491 = vpop.f32.mrf.mxu0
        %v1492 = vadd.f32 %v1434, %v1491
        %v1493 = vpop.f32.mrf.mxu0
        %v1494 = vadd.f32 %v1439, %v1493
        %1495 = vmatmul.bf16.gmra.mxu0 %v1460
        %v1496 = vpop.f32.mrf.mxu0
        %v1497 = vadd.f32 %v1444, %v1496
        %v1498 = vpop.f32.mrf.mxu0
        %v1499 = vadd.f32 %v1449, %v1498
        %1500 = vdwg.mxu0
        %1501 = vmatpush.bf16.msra.mxu0 %v1421
        %1502 = vmatpush.bf16.msra.mxu0 %v1417
        %1503 = vmatpush.bf16.msra.mxu0 %v1413
        %1504 = vmatpush.bf16.msra.mxu0 %v1409
        %1505 = vmatpush.bf16.msra.mxu0 %v1405
        %1506 = vmatpush.bf16.msra.mxu0 %v1401
        %1507 = vmatpush.bf16.msra.mxu0 %v1397
        %1508 = vmatpush.bf16.msra.mxu0 %v1393
        %1509 = vmatmul.bf16.gmra.mxu0 %v1459
        %v1510 = vpop.f32.mrf.mxu0
        %v1511 = vadd.f32 %v1434, %v1510
        %v1512 = vpop.f32.mrf.mxu0
        %v1513 = vadd.f32 %v1439, %v1512
        %1514 = vmatmul.bf16.gmra.mxu0 %v1460
        %v1515 = vpop.f32.mrf.mxu0
        %v1516 = vadd.f32 %v1444, %v1515
        %v1517 = vpop.f32.mrf.mxu0
        %v1518 = vadd.f32 %v1449, %v1517
        %1519 = vdwg.mxu0
        %1520 = vmatpush.bf16.msra.mxu0 %v1422
        %1521 = vmatpush.bf16.msra.mxu0 %v1418
        %1522 = vmatpush.bf16.msra.mxu0 %v1414
        %1523 = vmatpush.bf16.msra.mxu0 %v1410
        %1524 = vmatpush.bf16.msra.mxu0 %v1406
        %1525 = vmatpush.bf16.msra.mxu0 %v1402
        %1526 = vmatpush.bf16.msra.mxu0 %v1398
        %1527 = vmatpush.bf16.msra.mxu0 %v1394
        %1528 = vmatmul.bf16.gmra.mxu0 %v1459
        %v1529 = vpop.f32.mrf.mxu0
        %v1530 = vadd.f32 %v1434, %v1529
        %v1531 = vpop.f32.mrf.mxu0
        %v1532 = vadd.f32 %v1439, %v1531
        %1533 = vmatmul.bf16.gmra.mxu0 %v1460
        %v1534 = vpop.f32.mrf.mxu0
        %v1535 = vadd.f32 %v1444, %v1534
        %v1536 = vpop.f32.mrf.mxu0
        %v1537 = vadd.f32 %v1449, %v1536
        %1538 = vdwg.mxu0
        %v1539 = vmax.f32 %v1473, 0.0
        %v1540 = vmax.f32 %v1492, 0.0
        %v1541 = vmax.f32 %v1511, 0.0
        %v1542 = vmax.f32 %v1530, 0.0
        %v1543 = vmax.f32 %v1475, 0.0
        %v1544 = vmax.f32 %v1494, 0.0
        %v1545 = vmax.f32 %v1513, 0.0
        %v1546 = vmax.f32 %v1532, 0.0
        %v1547 = vmax.f32 %v1478, 0.0
        %v1548 = vmax.f32 %v1497, 0.0
        %v1549 = vmax.f32 %v1516, 0.0
        %v1550 = vmax.f32 %v1535, 0.0
        %v1551 = vmax.f32 %v1480, 0.0
        %v1552 = vmax.f32 %v1499, 0.0
        %v1553 = vmax.f32 %v1518, 0.0
        %v1554 = vmax.f32 %v1537, 0.0
        %v1555 = vld [vmem:[%s9] sm:$0xff]
        %v1556 = vld [vmem:[%s9 + $0x8] sm:$0xff]
        %v1557 = vld [vmem:[%s9 + $0x10] sm:$0xff]
        %v1558 = vld [vmem:[%s9 + $0x18] sm:$0xff]
        %1560 = vset.pattern.permute.xlu0 0
        %1561 = vperm.xlu0 %1560, %v1555
        %v1562 = vpop.permute.xlu0 %1561
        %1565 = vset.pattern.permute.xlu0 0
        %1566 = vperm.xlu0 %1565, %v1556
        %v1567 = vpop.permute.xlu0 %1566
        %1570 = vset.pattern.permute.xlu0 0
        %1571 = vperm.xlu0 %1570, %v1557
        %v1572 = vpop.permute.xlu0 %1571
        %1575 = vset.pattern.permute.xlu0 0
        %1576 = vperm.xlu0 %1575, %v1558
        %v1577 = vpop.permute.xlu0 %1576
        %v1579 = vmul.f32 %v1562, %v1539
        %v1580 = vmul.f32 %v1562, %v1540
        %v1581 = vmul.f32 %v1562, %v1541
        %v1582 = vmul.f32 %v1562, %v1542
        %v1583 = vmul.f32 %v1567, %v1543
        %v1584 = vmul.f32 %v1567, %v1544
        %v1585 = vmul.f32 %v1567, %v1545
        %v1586 = vmul.f32 %v1567, %v1546
        %v1587 = vmul.f32 %v1572, %v1547
        %v1588 = vmul.f32 %v1572, %v1548
        %v1589 = vmul.f32 %v1572, %v1549
        %v1590 = vmul.f32 %v1572, %v1550
        %v1591 = vmul.f32 %v1577, %v1551
        %v1592 = vmul.f32 %v1577, %v1552
        %v1593 = vmul.f32 %v1577, %v1553
        %v1594 = vmul.f32 %v1577, %v1554
        %v1595 = vadd.f32 %v1579, %v1583
        %v1596 = vadd.f32 %v1595, %v1587
        %v1597 = vadd.f32 %v1596, %v1591
        %v1598 = vrot.slane %v1597, 4
        %v1599 = vadd.f32 %v1597, %v1598
        %v1600 = vrot.slane %v1599, 2
        %v1601 = vadd.f32 %v1599, %v1600
        %v1602 = vrot.slane %v1601, 1
        %v1603 = vadd.f32 %v1601, %v1602
        %v1604 = vadd.f32 %v1580, %v1584
        %v1605 = vadd.f32 %v1604, %v1588
        %v1606 = vadd.f32 %v1605, %v1592
        %v1607 = vrot.slane %v1606, 4
        %v1608 = vadd.f32 %v1606, %v1607
        %v1609 = vrot.slane %v1608, 2
        %v1610 = vadd.f32 %v1608, %v1609
        %v1611 = vrot.slane %v1610, 1
        %v1612 = vadd.f32 %v1610, %v1611
        %v1613 = vadd.f32 %v1581, %v1585
        %v1614 = vadd.f32 %v1613, %v1589
        %v1615 = vadd.f32 %v1614, %v1593
        %v1616 = vrot.slane %v1615, 4
        %v1617 = vadd.f32 %v1615, %v1616
        %v1618 = vrot.slane %v1617, 2
        %v1619 = vadd.f32 %v1617, %v1618
        %v1620 = vrot.slane %v1619, 1
        %v1621 = vadd.f32 %v1619, %v1620
        %v1622 = vadd.f32 %v1582, %v1586
        %v1623 = vadd.f32 %v1622, %v1590
        %v1624 = vadd.f32 %v1623, %v1594
        %v1625 = vrot.slane %v1624, 4
        %v1626 = vadd.f32 %v1624, %v1625
        %v1627 = vrot.slane %v1626, 2
        %v1628 = vadd.f32 %v1626, %v1627
        %v1629 = vrot.slane %v1628, 1
        %v1630 = vadd.f32 %v1628, %v1629
        %v1631 = vld [vmem:[#allocation2] sm:$0x1]
        %1633 = vset.pattern.permute.xlu0 0
        %1634 = vperm.xlu0 %1633, %v1631
        %v1635 = vpop.permute.xlu0 %1634
        %v1637 = vperm.slane %v1635, 0
        %v1638 = vadd.f32 %v1603, %v1637
        %v1639 = vadd.f32 %v1612, %v1637
        %v1640 = vadd.f32 %v1621, %v1637
        %v1641 = vadd.f32 %v1630, %v1637
        %v1646 = vrot.slane %v1639, 7
        %v1647 = vrot.slane %v1640, 6
        %v1648 = vrot.slane %v1641, 5
        %vm1649 = vcmask 1040384
        %v1650 = vsel %vm1649, %v1638, %v1646
        %vm1651 = vcmask 1042434
        %v1652 = vsel %vm1651, %v1647, %v1648
        %vm1653 = vcmask 1041408
        %v1654 = vsel %vm1653, %v1650, %v1652
        %v1656 = vlaneseq
        %vm1657 = vcmp.ge.s32.totalorder %v1656, 0
        %vm1658 = vcmp.lt.s32.totalorder %v1656, 512
        %vm1659 = vmand %vm1657, %vm1658
        %1660 = vst.msk [vmem:[%s380] sm:$0xf] %vm1659, %v1654
        %s1661 = sand.u32 %s271, 1
        %s1662 = scalar_lea.sflag [#allocation4], %s1661
        %s1663 = sand.u32 %s271, 1
        %s1664 = smul.addr %s1663, 4
        %s1665 = scalar_lea.vmem [#allocation3], %s1664
        // Predicated region
        $region65: #{mlp_forward.1} parent=63 // pred_check
          %p1666 = pneg %p281
        $region66: #{mlp_forward.1} parent=63 // pred_check_branch
          %1668 = sbr.rel (%p1666) target = $region68
        $region67: #{mlp_forward.1} parent=63 // pred_region
          %s1669 = smul.u32 4, %s27
          %1671 = vsyncadd %s1662, 0
          %s1672 = scalar_lea.hbm %s11, %s1669
          %s1674 = sshll.u32 %s1665, 4
          %s1675 = int_to_ptr.vmem [resolvable:$true] %s1674
          %s1676 = sshll.u32 %s1672, 4
          %s1677 = int_to_ptr.hbm [resolvable:$true] %s1676
          %1679 = dma.vmem_to_hbm [thread:$0]  %s1675, 64, %s1677, %s1662
        $region68: #{mlp_forward.1} parent=63 // pred_fallthru
          _
      $region64: #{mlp_forward.1} parent=5 // pred_fallthru
        _
      %p1680 = scmp.le.s32.totalorder 2, %s22
      // Predicated region
      $region69: #{mlp_forward.1} parent=5 // pred_check
        %p1681 = pneg %p1680
      $region70: #{mlp_forward.1} parent=5 // pred_check_branch
        %1683 = sbr.rel (%p1681) target = $region72
      $region71: #{mlp_forward.1} parent=5 // pred_region
        %s1684 = ssub.s32 %s22, 2
        // Predicated region
        $region73: #{mlp_forward.1} parent=71 // pred_check
          %p1685 = pneg %p287
        $region74: #{mlp_forward.1} parent=71 // pred_check_branch
          %1687 = sbr.rel (%p1685) target = $region76
        $region75: #{mlp_forward.1} parent=71 // pred_region
          %s1688 = sand.u32 %s272, 1
          %s1689 = scalar_lea.sflag [#allocation4], %s1688
          %s1690 = sand.u32 %s272, 1
          %s1691 = smul.addr %s1690, 4
          %s1692 = scalar_lea.vmem [#allocation3], %s1691
          %1694 = dma.done %s1689, 64
        $region76: #{mlp_forward.1} parent=71 // pred_fallthru
          _
      $region72: #{mlp_forward.1} parent=5 // pred_fallthru
        _
    $region6: #{mlp_forward.1} parent=1 // loop_footer
      %s26 = sadd.s32 1, %s22
    $region7: #{mlp_forward.1} parent=1 // loop_footer_branch
      %21 = sbr.rel target = $region3
    $region8: #{mlp_forward.1} parent=1 // loop_exit
      _
    %1695 = vsyncpa [#allocation4], 1
    %s1696 = scalar_lea.sflag [#allocation4], 1
    %1697 = vsyncpa %s1696, 1

</llo_original>
